<compile_context>
chip_gen: v5e
topology: v5e:2x2
jax: 0.10.0
libtpu: 0.0.40
codegen_flags: <defaults>
</compile_context>

<pallas_src>
import functools

import jax
import jax.numpy as jnp
from jax.experimental import pallas as pl
from jax.experimental.pallas import tpu as pltpu

EPS = 1e-5
KSIZE = 7
STRIDE = 3
PAD = 3
VMEM_LIMIT = 32 * 1024 * 1024  # within the scoped default on v5e/v6e/v7x


# ---------------------------------------------------------------------------
# Kernel 1: 7x7 / stride-3 conv as 9 fat matmuls (K = 9*Cin) per image, plus
#           per-image partial BatchNorm statistics.  Grid: one step per image.
# ---------------------------------------------------------------------------
def conv_stats_kernel(xg_ref, wf_ref, conv_ref, psum_ref, pssq_ref, *, ho, wo):
    # xg_ref  : (1, Hg, Wg, 9*Cin)   space-to-depth input (stride-3 cell in lanes)
    # wf_ref  : (3, 3, 9*Cin, Cout)  folded weights (taps kh/kw in {7,8} are zero)
    # conv_ref: (1, Ho*Wo, Cout)     raw conv output (pre-BN)
    # psum/pssq_ref: (1, 1, Cout)    per-image channel sum / sum of squares
    nshift = wf_ref.shape[0]
    cout = wf_ref.shape[-1]
    m = ho * wo

    x = xg_ref[0]                                    # (Hg, Wg, 9*Cin)
    acc = jnp.zeros((m, cout), jnp.float32)
    # Tap fusion: the 7x7 window is covered by 3x3 group shifts (qh, qw); the
    # stride-3 remainders and Cin are folded into the contraction dimension.
    for qh in range(nshift):
        for qw in range(nshift):
            patch = x[qh:qh + ho, qw:qw + wo, :].reshape(m, -1)
            acc = acc + jnp.dot(patch, wf_ref[qh, qw],
                                preferred_element_type=jnp.float32)
    # Conv bias intentionally omitted: cancelled exactly by training-mode BN.
    conv_ref[0] = acc
    psum_ref[0] = jnp.sum(acc, axis=0, keepdims=True)
    pssq_ref[0] = jnp.sum(acc * acc, axis=0, keepdims=True)


# ---------------------------------------------------------------------------
# Kernel 2: finish BatchNorm (fused per-channel scale/shift) + ReLU.
# ---------------------------------------------------------------------------
def bn_relu_kernel(conv_ref, psum_ref, pssq_ref, gamma_ref, beta_ref, out_ref,
                   *, count):
    inv_n = 1.0 / count
    s = jnp.sum(psum_ref[...], axis=0)               # (1, Cout) total sum
    ss = jnp.sum(pssq_ref[...], axis=0)              # (1, Cout) total sum of squares
    mean = s * inv_n
    var = ss * inv_n - mean * mean                   # biased var (PyTorch training)
    scale = gamma_ref[...] * jax.lax.rsqrt(var + EPS)
    shift = beta_ref[...] - mean * scale
    # Fused BN affine: one mul + one add per element, then ReLU.
    out_ref[0] = jnp.maximum(conv_ref[0] * scale + shift, 0.0)


# ---------------------------------------------------------------------------
# Wrapper: layout plumbing only (NCHW<->NHWC, padding, space-to-depth, weight
# folding) — all arithmetic on activations happens inside the Pallas kernels.
# ---------------------------------------------------------------------------
@jax.jit
def start2d_forward(x_nchw, params):
    """x_nchw: (N, Cin, H, W) f32 -> (N, Cout, Ho, Wo) f32."""
    n, cin, h, w_in = x_nchw.shape
    cout = params["w"].shape[0]
    ho = (h + 2 * PAD - KSIZE) // STRIDE + 1
    wo = (w_in + 2 * PAD - KSIZE) // STRIDE + 1
    m = ho * wo
    nshift = -(-KSIZE // STRIDE)                     # 3 group shifts cover 7 taps
    kpad = nshift * STRIDE                           # taps padded 7 -> 9 (zeros)
    hg, wg = ho + nshift - 1, wo + nshift - 1        # stride-3 group counts
    kdim = STRIDE * STRIDE * cin                     # 9*Cin contraction per shift

    # NCHW -> NHWC, conv zero-padding, pad to whole stride-3 cells, space-to-depth.
    x = jnp.transpose(x_nchw, (0, 2, 3, 1)).astype(jnp.float32)
    x = jnp.pad(x, ((0, 0),
                    (PAD, STRIDE * hg - h - PAD),
                    (PAD, STRIDE * wg - w_in - PAD),
                    (0, 0)))
    xg = x.reshape(n, hg, STRIDE, wg, STRIDE, cin)
    xg = jnp.transpose(xg, (0, 1, 3, 2, 4, 5)).reshape(n, hg, wg, kdim)

    # OIHW 7x7 weights -> (3, 3, 9*Cin, Cout); padded taps are zero.
    w = jnp.transpose(params["w"], (2, 3, 1, 0)).astype(jnp.float32)
    w = jnp.pad(w, ((0, kpad - KSIZE), (0, kpad - KSIZE), (0, 0), (0, 0)))
    wf = w.reshape(nshift, STRIDE, nshift, STRIDE, cin, cout)
    wf = jnp.transpose(wf, (0, 2, 1, 3, 4, 5)).reshape(nshift, nshift, kdim, cout)

    gamma = params["gamma"].reshape(1, cout).astype(jnp.float32)
    beta = params["beta"].reshape(1, cout).astype(jnp.float32)

    # TODO(synk): on v6e/v7x, cast xg/wf to bf16 (keep f32 accumulation & stats)
    # and add an H-band grid axis with halo for production-size spatial dims.

    # ---- pass 1: conv + per-image partial BN stats ----
    conv_out, psum, pssq = pl.pallas_call(
        functools.partial(conv_stats_kernel, ho=ho, wo=wo),
        grid=(n,),
        in_specs=[
            pl.BlockSpec((1, hg, wg, kdim), lambda i: (i, 0, 0, 0)),
            pl.BlockSpec((nshift, nshift, kdim, cout), lambda i: (0, 0, 0, 0)),
        ],
        out_specs=[
            pl.BlockSpec((1, m, cout), lambda i: (i, 0, 0)),
            pl.BlockSpec((1, 1, cout), lambda i: (i, 0, 0)),
            pl.BlockSpec((1, 1, cout), lambda i: (i, 0, 0)),
        ],
        out_shape=[
            jax.ShapeDtypeStruct((n, m, cout), jnp.float32),
            jax.ShapeDtypeStruct((n, 1, cout), jnp.float32),
            jax.ShapeDtypeStruct((n, 1, cout), jnp.float32),
        ],
        compiler_params=pltpu.CompilerParams(
            dimension_semantics=("parallel",),
            vmem_limit_bytes=VMEM_LIMIT),
    )(xg, wf)

    # ---- pass 2: fold stats into scale/shift, normalize, ReLU ----
    out = pl.pallas_call(
        functools.partial(bn_relu_kernel, count=float(n * m)),
        grid=(n,),
        in_specs=[
            pl.BlockSpec((1, m, cout), lambda i: (i, 0, 0)),
            pl.BlockSpec((n, 1, cout), lambda i: (0, 0, 0)),
            pl.BlockSpec((n, 1, cout), lambda i: (0, 0, 0)),
            pl.BlockSpec((1, cout), lambda i: (0, 0)),
            pl.BlockSpec((1, cout), lambda i: (0, 0)),
        ],
        out_specs=pl.BlockSpec((1, m, cout), lambda i: (i, 0, 0)),
        out_shape=jax.ShapeDtypeStruct((n, m, cout), jnp.float32),
        compiler_params=pltpu.CompilerParams(
            dimension_semantics=("parallel",),
            vmem_limit_bytes=VMEM_LIMIT),
    )(conv_out, psum, pssq, gamma, beta)

    out = out.reshape(n, ho, wo, cout)
    return jnp.transpose(out, (0, 3, 1, 2))          # back to NCHW


def init_params(key, in_chan, mid_chan):
    """Parameters mirroring nn.Conv2d(in, mid, 7) + nn.BatchNorm2d(mid) defaults."""
    k1, k2 = jax.random.split(key)
    fan_in = in_chan * KSIZE * KSIZE
    bound = 1.0 / (fan_in ** 0.5)
    return {
        "w": jax.random.uniform(k1, (mid_chan, in_chan, KSIZE, KSIZE),
                                minval=-bound, maxval=bound, dtype=jnp.float32),
        # The conv bias exists in the module, but training-mode BN cancels it,
        # so the kernels never load it (perf-review item).
        "b": jax.random.uniform(k2, (mid_chan,), minval=-bound, maxval=bound,
                                dtype=jnp.float32),
        "gamma": jnp.ones((mid_chan,), jnp.float32),
        "beta": jnp.zeros((mid_chan,), jnp.float32),
    }


def reference_forward(x_nchw, params):
    """Plain-XLA reference: Conv2d(7, pad=3, stride=3) -> BN(train) -> ReLU."""
    y = jax.lax.conv_general_dilated(
        x_nchw.astype(jnp.float32), params["w"].astype(jnp.float32),
        window_strides=(STRIDE, STRIDE), padding=((PAD, PAD), (PAD, PAD)),
        dimension_numbers=("NCHW", "OIHW", "NCHW"),
        precision=jax.lax.Precision.HIGHEST)
    y = y + params["b"][None, :, None, None]
    mean = jnp.mean(y, axis=(0, 2, 3), keepdims=True)
    var = jnp.var(y, axis=(0, 2, 3), keepdims=True)
    y = (y - mean) * jax.lax.rsqrt(var + EPS)
    y = y * params["gamma"][None, :, None, None] + params["beta"][None, :, None, None]
    return jnp.maximum(y, 0.0)


if __name__ == "__main__":
    N, IN_CHAN, H, W = 2, 4, 16, 16
    MID_CHAN = 32

    key = jax.random.PRNGKey(0)
    kx, kp = jax.random.split(key)
    x = jax.random.normal(kx, (N, IN_CHAN, H, W), dtype=jnp.float32)
    params = init_params(kp, IN_CHAN, MID_CHAN)

    out = start2d_forward(x, params)
    jax.block_until_ready(out)

    ho = (H + 2 * PAD - KSIZE) // STRIDE + 1
    wo = (W + 2 * PAD - KSIZE) // STRIDE + 1
    assert out.shape == (N, MID_CHAN, ho, wo), out.shape

    # Coarse sanity check vs. plain-XLA reference (guards against indexing bugs).
    ref = reference_forward(x, params)
    err = float(jnp.max(jnp.abs(out - ref)))
    assert err < 5e-2, f"max abs error vs reference: {err}"

    print("KERNEL_OK")
</pallas_src>

<mosaic_0001>
module attributes {stable_mosaic.version = 11 : i64} {
  func.func @conv_stats_kernel(%arg0: i32, %arg1: memref<1x8x8x36xf32, #tpu.memory_space<vmem>>, %arg2: memref<3x3x36x32xf32, #tpu.memory_space<vmem>>, %arg3: memref<1x36x32xf32, #tpu.memory_space<vmem>>, %arg4: memref<1x1x32xf32, #tpu.memory_space<vmem>>, %arg5: memref<1x1x32xf32, #tpu.memory_space<vmem>>) attributes {dimension_semantics = [#tpu.dimension_semantics<parallel>], iteration_bounds = array<i64: 2>, scalar_prefetch = 0 : i64, scratch_operands = 0 : i64, tpu.core_type = #tpu.core_type<tc>, window_params = [{transform_indices = @transform_0, window_bounds = array<i64: 1, 8, 8, 36>}, {pipeline_mode = #tpu.pipeline_mode<synchronous>, transform_indices = @transform_1, window_bounds = array<i64: 3, 3, 36, 32>}, {transform_indices = @transform_2, window_bounds = array<i64: 1, 36, 32>}, {transform_indices = @transform_3, window_bounds = array<i64: 1, 1, 32>}, {transform_indices = @transform_4, window_bounds = array<i64: 1, 1, 32>}]} {
    %c0 = arith.constant 0 : index
    %c0_0 = arith.constant 0 : index
    %c0_1 = arith.constant 0 : index
    %c0_2 = arith.constant 0 : index
    %0 = vector.load %arg1[%c0, %c0_0, %c0_1, %c0_2] : memref<1x8x8x36xf32, #tpu.memory_space<vmem>>, vector<1x8x8x36xf32>
    %1 = vector.shape_cast %0 : vector<1x8x8x36xf32> to vector<8x8x36xf32>
    %cst = arith.constant 0.000000e+00 : f32
    %2 = vector.broadcast %cst : f32 to vector<36x32xf32>
    %3 = vector.extract_strided_slice %1 {offsets = [0, 0, 0], sizes = [6, 6, 36], strides = [1, 1, 1]} : vector<8x8x36xf32> to vector<6x6x36xf32>
    %4 = vector.shape_cast %3 : vector<6x6x36xf32> to vector<36x36xf32>
    %c0_3 = arith.constant 0 : index
    %c0_4 = arith.constant 0 : index
    %c0_5 = arith.constant 0 : index
    %c0_6 = arith.constant 0 : index
    %5 = vector.load %arg2[%c0_3, %c0_4, %c0_5, %c0_6] : memref<3x3x36x32xf32, #tpu.memory_space<vmem>>, vector<1x1x36x32xf32>
    %6 = vector.shape_cast %5 : vector<1x1x36x32xf32> to vector<36x32xf32>
    %cst_7 = arith.constant dense<0.000000e+00> : vector<36x32xf32>
    %7 = tpu.matmul %4, %6, %cst_7 {dimension_numbers = #tpu.dot_dimension_numbers<[1], [0], [0], [1], [0, 0, 1, 1], [], []>} : vector<36x36xf32>, vector<36x32xf32>, vector<36x32xf32> -> vector<36x32xf32>
    %8 = arith.addf %2, %7 : vector<36x32xf32>
    %9 = vector.extract_strided_slice %1 {offsets = [0, 1, 0], sizes = [6, 6, 36], strides = [1, 1, 1]} : vector<8x8x36xf32> to vector<6x6x36xf32>
    %10 = vector.shape_cast %9 : vector<6x6x36xf32> to vector<36x36xf32>
    %c0_8 = arith.constant 0 : index
    %c1 = arith.constant 1 : index
    %c0_9 = arith.constant 0 : index
    %c0_10 = arith.constant 0 : index
    %11 = vector.load %arg2[%c0_8, %c1, %c0_9, %c0_10] : memref<3x3x36x32xf32, #tpu.memory_space<vmem>>, vector<1x1x36x32xf32>
    %12 = vector.shape_cast %11 : vector<1x1x36x32xf32> to vector<36x32xf32>
    %cst_11 = arith.constant dense<0.000000e+00> : vector<36x32xf32>
    %13 = tpu.matmul %10, %12, %cst_11 {dimension_numbers = #tpu.dot_dimension_numbers<[1], [0], [0], [1], [0, 0, 1, 1], [], []>} : vector<36x36xf32>, vector<36x32xf32>, vector<36x32xf32> -> vector<36x32xf32>
    %14 = arith.addf %8, %13 : vector<36x32xf32>
    %15 = vector.extract_strided_slice %1 {offsets = [0, 2, 0], sizes = [6, 6, 36], strides = [1, 1, 1]} : vector<8x8x36xf32> to vector<6x6x36xf32>
    %16 = vector.shape_cast %15 : vector<6x6x36xf32> to vector<36x36xf32>
    %c0_12 = arith.constant 0 : index
    %c2 = arith.constant 2 : index
    %c0_13 = arith.constant 0 : index
    %c0_14 = arith.constant 0 : index
    %17 = vector.load %arg2[%c0_12, %c2, %c0_13, %c0_14] : memref<3x3x36x32xf32, #tpu.memory_space<vmem>>, vector<1x1x36x32xf32>
    %18 = vector.shape_cast %17 : vector<1x1x36x32xf32> to vector<36x32xf32>
    %cst_15 = arith.constant dense<0.000000e+00> : vector<36x32xf32>
    %19 = tpu.matmul %16, %18, %cst_15 {dimension_numbers = #tpu.dot_dimension_numbers<[1], [0], [0], [1], [0, 0, 1, 1], [], []>} : vector<36x36xf32>, vector<36x32xf32>, vector<36x32xf32> -> vector<36x32xf32>
    %20 = arith.addf %14, %19 : vector<36x32xf32>
    %21 = vector.extract_strided_slice %1 {offsets = [1, 0, 0], sizes = [6, 6, 36], strides = [1, 1, 1]} : vector<8x8x36xf32> to vector<6x6x36xf32>
    %22 = vector.shape_cast %21 : vector<6x6x36xf32> to vector<36x36xf32>
    %c1_16 = arith.constant 1 : index
    %c0_17 = arith.constant 0 : index
    %c0_18 = arith.constant 0 : index
    %c0_19 = arith.constant 0 : index
    %23 = vector.load %arg2[%c1_16, %c0_17, %c0_18, %c0_19] : memref<3x3x36x32xf32, #tpu.memory_space<vmem>>, vector<1x1x36x32xf32>
    %24 = vector.shape_cast %23 : vector<1x1x36x32xf32> to vector<36x32xf32>
    %cst_20 = arith.constant dense<0.000000e+00> : vector<36x32xf32>
    %25 = tpu.matmul %22, %24, %cst_20 {dimension_numbers = #tpu.dot_dimension_numbers<[1], [0], [0], [1], [0, 0, 1, 1], [], []>} : vector<36x36xf32>, vector<36x32xf32>, vector<36x32xf32> -> vector<36x32xf32>
    %26 = arith.addf %20, %25 : vector<36x32xf32>
    %27 = vector.extract_strided_slice %1 {offsets = [1, 1, 0], sizes = [6, 6, 36], strides = [1, 1, 1]} : vector<8x8x36xf32> to vector<6x6x36xf32>
    %28 = vector.shape_cast %27 : vector<6x6x36xf32> to vector<36x36xf32>
    %c1_21 = arith.constant 1 : index
    %c1_22 = arith.constant 1 : index
    %c0_23 = arith.constant 0 : index
    %c0_24 = arith.constant 0 : index
    %29 = vector.load %arg2[%c1_21, %c1_22, %c0_23, %c0_24] : memref<3x3x36x32xf32, #tpu.memory_space<vmem>>, vector<1x1x36x32xf32>
    %30 = vector.shape_cast %29 : vector<1x1x36x32xf32> to vector<36x32xf32>
    %cst_25 = arith.constant dense<0.000000e+00> : vector<36x32xf32>
    %31 = tpu.matmul %28, %30, %cst_25 {dimension_numbers = #tpu.dot_dimension_numbers<[1], [0], [0], [1], [0, 0, 1, 1], [], []>} : vector<36x36xf32>, vector<36x32xf32>, vector<36x32xf32> -> vector<36x32xf32>
    %32 = arith.addf %26, %31 : vector<36x32xf32>
    %33 = vector.extract_strided_slice %1 {offsets = [1, 2, 0], sizes = [6, 6, 36], strides = [1, 1, 1]} : vector<8x8x36xf32> to vector<6x6x36xf32>
    %34 = vector.shape_cast %33 : vector<6x6x36xf32> to vector<36x36xf32>
    %c1_26 = arith.constant 1 : index
    %c2_27 = arith.constant 2 : index
    %c0_28 = arith.constant 0 : index
    %c0_29 = arith.constant 0 : index
    %35 = vector.load %arg2[%c1_26, %c2_27, %c0_28, %c0_29] : memref<3x3x36x32xf32, #tpu.memory_space<vmem>>, vector<1x1x36x32xf32>
    %36 = vector.shape_cast %35 : vector<1x1x36x32xf32> to vector<36x32xf32>
    %cst_30 = arith.constant dense<0.000000e+00> : vector<36x32xf32>
    %37 = tpu.matmul %34, %36, %cst_30 {dimension_numbers = #tpu.dot_dimension_numbers<[1], [0], [0], [1], [0, 0, 1, 1], [], []>} : vector<36x36xf32>, vector<36x32xf32>, vector<36x32xf32> -> vector<36x32xf32>
    %38 = arith.addf %32, %37 : vector<36x32xf32>
    %39 = vector.extract_strided_slice %1 {offsets = [2, 0, 0], sizes = [6, 6, 36], strides = [1, 1, 1]} : vector<8x8x36xf32> to vector<6x6x36xf32>
    %40 = vector.shape_cast %39 : vector<6x6x36xf32> to vector<36x36xf32>
    %c2_31 = arith.constant 2 : index
    %c0_32 = arith.constant 0 : index
    %c0_33 = arith.constant 0 : index
    %c0_34 = arith.constant 0 : index
    %41 = vector.load %arg2[%c2_31, %c0_32, %c0_33, %c0_34] : memref<3x3x36x32xf32, #tpu.memory_space<vmem>>, vector<1x1x36x32xf32>
    %42 = vector.shape_cast %41 : vector<1x1x36x32xf32> to vector<36x32xf32>
    %cst_35 = arith.constant dense<0.000000e+00> : vector<36x32xf32>
    %43 = tpu.matmul %40, %42, %cst_35 {dimension_numbers = #tpu.dot_dimension_numbers<[1], [0], [0], [1], [0, 0, 1, 1], [], []>} : vector<36x36xf32>, vector<36x32xf32>, vector<36x32xf32> -> vector<36x32xf32>
    %44 = arith.addf %38, %43 : vector<36x32xf32>
    %45 = vector.extract_strided_slice %1 {offsets = [2, 1, 0], sizes = [6, 6, 36], strides = [1, 1, 1]} : vector<8x8x36xf32> to vector<6x6x36xf32>
    %46 = vector.shape_cast %45 : vector<6x6x36xf32> to vector<36x36xf32>
    %c2_36 = arith.constant 2 : index
    %c1_37 = arith.constant 1 : index
    %c0_38 = arith.constant 0 : index
    %c0_39 = arith.constant 0 : index
    %47 = vector.load %arg2[%c2_36, %c1_37, %c0_38, %c0_39] : memref<3x3x36x32xf32, #tpu.memory_space<vmem>>, vector<1x1x36x32xf32>
    %48 = vector.shape_cast %47 : vector<1x1x36x32xf32> to vector<36x32xf32>
    %cst_40 = arith.constant dense<0.000000e+00> : vector<36x32xf32>
    %49 = tpu.matmul %46, %48, %cst_40 {dimension_numbers = #tpu.dot_dimension_numbers<[1], [0], [0], [1], [0, 0, 1, 1], [], []>} : vector<36x36xf32>, vector<36x32xf32>, vector<36x32xf32> -> vector<36x32xf32>
    %50 = arith.addf %44, %49 : vector<36x32xf32>
    %51 = vector.extract_strided_slice %1 {offsets = [2, 2, 0], sizes = [6, 6, 36], strides = [1, 1, 1]} : vector<8x8x36xf32> to vector<6x6x36xf32>
    %52 = vector.shape_cast %51 : vector<6x6x36xf32> to vector<36x36xf32>
    %c2_41 = arith.constant 2 : index
    %c2_42 = arith.constant 2 : index
    %c0_43 = arith.constant 0 : index
    %c0_44 = arith.constant 0 : index
    %53 = vector.load %arg2[%c2_41, %c2_42, %c0_43, %c0_44] : memref<3x3x36x32xf32, #tpu.memory_space<vmem>>, vector<1x1x36x32xf32>
    %54 = vector.shape_cast %53 : vector<1x1x36x32xf32> to vector<36x32xf32>
    %cst_45 = arith.constant dense<0.000000e+00> : vector<36x32xf32>
    %55 = tpu.matmul %52, %54, %cst_45 {dimension_numbers = #tpu.dot_dimension_numbers<[1], [0], [0], [1], [0, 0, 1, 1], [], []>} : vector<36x36xf32>, vector<36x32xf32>, vector<36x32xf32> -> vector<36x32xf32>
    %56 = arith.addf %50, %55 : vector<36x32xf32>
    %c0_46 = arith.constant 0 : index
    %c0_47 = arith.constant 0 : index
    %c0_48 = arith.constant 0 : index
    %57 = vector.load %arg3[%c0_46, %c0_47, %c0_48] : memref<1x36x32xf32, #tpu.memory_space<vmem>>, vector<1x36x32xf32>
    %58 = vector.shape_cast %57 : vector<1x36x32xf32> to vector<36x32xf32>
    %59 = vector.shape_cast %56 : vector<36x32xf32> to vector<1x36x32xf32>
    tpu.vector_store %arg3[%c0_46, %c0_47, %c0_48], %59 {strides = array<i32>} : memref<1x36x32xf32, #tpu.memory_space<vmem>>, vector<1x36x32xf32>,
    %cst_49 = arith.constant dense<0.000000e+00> : vector<32xf32>
    %60 = vector.multi_reduction <add>, %56, %cst_49 [0] : vector<36x32xf32> to vector<32xf32>
    %61 = vector.shape_cast %60 : vector<32xf32> to vector<1x32xf32>
    %c0_50 = arith.constant 0 : index
    %c0_51 = arith.constant 0 : index
    %c0_52 = arith.constant 0 : index
    %62 = vector.load %arg4[%c0_50, %c0_51, %c0_52] : memref<1x1x32xf32, #tpu.memory_space<vmem>>, vector<1x1x32xf32>
    %63 = vector.shape_cast %62 : vector<1x1x32xf32> to vector<1x32xf32>
    %64 = vector.shape_cast %61 : vector<1x32xf32> to vector<1x1x32xf32>
    tpu.vector_store %arg4[%c0_50, %c0_51, %c0_52], %64 {strides = array<i32>} : memref<1x1x32xf32, #tpu.memory_space<vmem>>, vector<1x1x32xf32>,
    %65 = arith.mulf %56, %56 : vector<36x32xf32>
    %cst_53 = arith.constant dense<0.000000e+00> : vector<32xf32>
    %66 = vector.multi_reduction <add>, %65, %cst_53 [0] : vector<36x32xf32> to vector<32xf32>
    %67 = vector.shape_cast %66 : vector<32xf32> to vector<1x32xf32>
    %c0_54 = arith.constant 0 : index
    %c0_55 = arith.constant 0 : index
    %c0_56 = arith.constant 0 : index
    %68 = vector.load %arg5[%c0_54, %c0_55, %c0_56] : memref<1x1x32xf32, #tpu.memory_space<vmem>>, vector<1x1x32xf32>
    %69 = vector.shape_cast %68 : vector<1x1x32xf32> to vector<1x32xf32>
    %70 = vector.shape_cast %67 : vector<1x32xf32> to vector<1x1x32xf32>
    tpu.vector_store %arg5[%c0_54, %c0_55, %c0_56], %70 {strides = array<i32>} : memref<1x1x32xf32, #tpu.memory_space<vmem>>, vector<1x1x32xf32>,
    return
  }
  func.func @transform_0(%arg0: i32) -> (i32, i32, i32, i32) {
    %c0_i32 = arith.constant 0 : i32
    %c0_i32_0 = arith.constant 0 : i32
    %c0_i32_1 = arith.constant 0 : i32
    %c0_i32_2 = arith.constant 0 : i32
    return %arg0, %c0_i32, %c0_i32_0, %c0_i32_1 : i32, i32, i32, i32
  }
  func.func @transform_1(%arg0: i32) -> (i32, i32, i32, i32) {
    %c0_i32 = arith.constant 0 : i32
    %c0_i32_0 = arith.constant 0 : i32
    %c0_i32_1 = arith.constant 0 : i32
    %c0_i32_2 = arith.constant 0 : i32
    %c0_i32_3 = arith.constant 0 : i32
    return %c0_i32, %c0_i32_0, %c0_i32_1, %c0_i32_2 : i32, i32, i32, i32
  }
  func.func @transform_2(%arg0: i32) -> (i32, i32, i32) {
    %c0_i32 = arith.constant 0 : i32
    %c0_i32_0 = arith.constant 0 : i32
    %c0_i32_1 = arith.constant 0 : i32
    return %arg0, %c0_i32, %c0_i32_0 : i32, i32, i32
  }
  func.func @transform_3(%arg0: i32) -> (i32, i32, i32) {
    %c0_i32 = arith.constant 0 : i32
    %c0_i32_0 = arith.constant 0 : i32
    %c0_i32_1 = arith.constant 0 : i32
    return %arg0, %c0_i32, %c0_i32_0 : i32, i32, i32
  }
  func.func @transform_4(%arg0: i32) -> (i32, i32, i32) {
    %c0_i32 = arith.constant 0 : i32
    %c0_i32_0 = arith.constant 0 : i32
    %c0_i32_1 = arith.constant 0 : i32
    return %arg0, %c0_i32, %c0_i32_0 : i32, i32, i32
  }
}

module attributes {stable_mosaic.version = 11 : i64} {
  func.func @bn_relu_kernel(%arg0: i32, %arg1: memref<1x36x32xf32, #tpu.memory_space<vmem>>, %arg2: memref<2x1x32xf32, #tpu.memory_space<vmem>>, %arg3: memref<2x1x32xf32, #tpu.memory_space<vmem>>, %arg4: memref<1x32xf32, #tpu.memory_space<vmem>>, %arg5: memref<1x32xf32, #tpu.memory_space<vmem>>, %arg6: memref<1x36x32xf32, #tpu.memory_space<vmem>>) attributes {dimension_semantics = [#tpu.dimension_semantics<parallel>], iteration_bounds = array<i64: 2>, scalar_prefetch = 0 : i64, scratch_operands = 0 : i64, tpu.core_type = #tpu.core_type<tc>, window_params = [{transform_indices = @transform_0, window_bounds = array<i64: 1, 36, 32>}, {pipeline_mode = #tpu.pipeline_mode<synchronous>, transform_indices = @transform_1, window_bounds = array<i64: 2, 1, 32>}, {pipeline_mode = #tpu.pipeline_mode<synchronous>, transform_indices = @transform_2, window_bounds = array<i64: 2, 1, 32>}, {pipeline_mode = #tpu.pipeline_mode<synchronous>, transform_indices = @transform_3, window_bounds = array<i64: 1, 32>}, {pipeline_mode = #tpu.pipeline_mode<synchronous>, transform_indices = @transform_4, window_bounds = array<i64: 1, 32>}, {transform_indices = @transform_5, window_bounds = array<i64: 1, 36, 32>}]} {
    %c0 = arith.constant 0 : index
    %c0_0 = arith.constant 0 : index
    %c0_1 = arith.constant 0 : index
    %0 = vector.load %arg2[%c0, %c0_0, %c0_1] : memref<2x1x32xf32, #tpu.memory_space<vmem>>, vector<2x1x32xf32>
    %cst = arith.constant dense<0.000000e+00> : vector<1x32xf32>
    %1 = vector.multi_reduction <add>, %0, %cst [0] : vector<2x1x32xf32> to vector<1x32xf32>
    %c0_2 = arith.constant 0 : index
    %c0_3 = arith.constant 0 : index
    %c0_4 = arith.constant 0 : index
    %2 = vector.load %arg3[%c0_2, %c0_3, %c0_4] : memref<2x1x32xf32, #tpu.memory_space<vmem>>, vector<2x1x32xf32>
    %cst_5 = arith.constant dense<0.000000e+00> : vector<1x32xf32>
    %3 = vector.multi_reduction <add>, %2, %cst_5 [0] : vector<2x1x32xf32> to vector<1x32xf32>
    %cst_6 = arith.constant 0.013888889 : f32
    %4 = vector.broadcast %cst_6 : f32 to vector<1x32xf32>
    %5 = arith.mulf %1, %4 : vector<1x32xf32>
    %cst_7 = arith.constant 0.013888889 : f32
    %6 = vector.broadcast %cst_7 : f32 to vector<1x32xf32>
    %7 = arith.mulf %3, %6 : vector<1x32xf32>
    %8 = arith.mulf %5, %5 : vector<1x32xf32>
    %9 = arith.subf %7, %8 : vector<1x32xf32>
    %c0_8 = arith.constant 0 : index
    %c0_9 = arith.constant 0 : index
    %10 = vector.load %arg4[%c0_8, %c0_9] : memref<1x32xf32, #tpu.memory_space<vmem>>, vector<1x32xf32>
    %cst_10 = arith.constant 9.99999974E-6 : f32
    %11 = vector.broadcast %cst_10 : f32 to vector<1x32xf32>
    %12 = arith.addf %9, %11 : vector<1x32xf32>
    %13 = math.rsqrt %12 : vector<1x32xf32>
    %14 = arith.mulf %10, %13 : vector<1x32xf32>
    %c0_11 = arith.constant 0 : index
    %c0_12 = arith.constant 0 : index
    %15 = vector.load %arg5[%c0_11, %c0_12] : memref<1x32xf32, #tpu.memory_space<vmem>>, vector<1x32xf32>
    %16 = arith.mulf %5, %14 : vector<1x32xf32>
    %17 = arith.subf %15, %16 : vector<1x32xf32>
    %c0_13 = arith.constant 0 : index
    %c0_14 = arith.constant 0 : index
    %c0_15 = arith.constant 0 : index
    %18 = vector.load %arg1[%c0_13, %c0_14, %c0_15] : memref<1x36x32xf32, #tpu.memory_space<vmem>>, vector<1x36x32xf32>
    %19 = vector.shape_cast %18 : vector<1x36x32xf32> to vector<36x32xf32>
    %20 = vector.broadcast %14 : vector<1x32xf32> to vector<36x32xf32>
    %21 = arith.mulf %19, %20 : vector<36x32xf32>
    %22 = vector.broadcast %17 : vector<1x32xf32> to vector<36x32xf32>
    %23 = arith.addf %21, %22 : vector<36x32xf32>
    %cst_16 = arith.constant 0.000000e+00 : f32
    %24 = vector.broadcast %cst_16 : f32 to vector<36x32xf32>
    %25 = arith.maximumf %23, %24 : vector<36x32xf32>
    %c0_17 = arith.constant 0 : index
    %c0_18 = arith.constant 0 : index
    %c0_19 = arith.constant 0 : index
    %26 = vector.load %arg6[%c0_17, %c0_18, %c0_19] : memref<1x36x32xf32, #tpu.memory_space<vmem>>, vector<1x36x32xf32>
    %27 = vector.shape_cast %26 : vector<1x36x32xf32> to vector<36x32xf32>
    %28 = vector.shape_cast %25 : vector<36x32xf32> to vector<1x36x32xf32>
    tpu.vector_store %arg6[%c0_17, %c0_18, %c0_19], %28 {strides = array<i32>} : memref<1x36x32xf32, #tpu.memory_space<vmem>>, vector<1x36x32xf32>,
    return
  }
  func.func @transform_0(%arg0: i32) -> (i32, i32, i32) {
    %c0_i32 = arith.constant 0 : i32
    %c0_i32_0 = arith.constant 0 : i32
    %c0_i32_1 = arith.constant 0 : i32
    return %arg0, %c0_i32, %c0_i32_0 : i32, i32, i32
  }
  func.func @transform_1(%arg0: i32) -> (i32, i32, i32) {
    %c0_i32 = arith.constant 0 : i32
    %c0_i32_0 = arith.constant 0 : i32
    %c0_i32_1 = arith.constant 0 : i32
    %c0_i32_2 = arith.constant 0 : i32
    return %c0_i32, %c0_i32_0, %c0_i32_1 : i32, i32, i32
  }
  func.func @transform_2(%arg0: i32) -> (i32, i32, i32) {
    %c0_i32 = arith.constant 0 : i32
    %c0_i32_0 = arith.constant 0 : i32
    %c0_i32_1 = arith.constant 0 : i32
    %c0_i32_2 = arith.constant 0 : i32
    return %c0_i32, %c0_i32_0, %c0_i32_1 : i32, i32, i32
  }
  func.func @transform_3(%arg0: i32) -> (i32, i32) {
    %c0_i32 = arith.constant 0 : i32
    %c0_i32_0 = arith.constant 0 : i32
    %c0_i32_1 = arith.constant 0 : i32
    return %c0_i32, %c0_i32_0 : i32, i32
  }
  func.func @transform_4(%arg0: i32) -> (i32, i32) {
    %c0_i32 = arith.constant 0 : i32
    %c0_i32_0 = arith.constant 0 : i32
    %c0_i32_1 = arith.constant 0 : i32
    return %c0_i32, %c0_i32_0 : i32, i32
  }
  func.func @transform_5(%arg0: i32) -> (i32, i32, i32) {
    %c0_i32 = arith.constant 0 : i32
    %c0_i32_0 = arith.constant 0 : i32
    %c0_i32_1 = arith.constant 0 : i32
    return %arg0, %c0_i32, %c0_i32_0 : i32, i32, i32
  }
}

</mosaic_0001>

<llo_original>
// kernel: start2d_forward.3
$region0: #{start2d_forward.3}
  #allocation0 [shape = 'u32[]', space=smem, size = 0x4, offset = 0x4, fixed_abs, tag = 'smem constant byte address 0x4 - core index']
  #allocation1 [shape = 'u32[72,128]{1,0:T(1,128)}', space=vmem, size = 0x9000, scoped, tag = 'internal scratch']
  %s0 = inlined_call_operand.vmem [shape: f32[2,36,32], index: 0, kind: input, shape index: {}]
  %s1 = inlined_call_operand.vmem [shape: f32[2,1,32], index: 1, kind: input, shape index: {}]
  %s2 = inlined_call_operand.vmem [shape: f32[2,1,32], index: 2, kind: input, shape index: {}]
  %s3 = inlined_call_operand.vmem [shape: f32[1,32], index: 3, kind: input, shape index: {}]
  %s4 = inlined_call_operand.vmem [shape: f32[1,32], index: 4, kind: input, shape index: {}]
  %s5 = inlined_call_operand.vmem [shape: f32[2,36,32], index: 5, kind: output, shape index: {}]
  %s6 = sld [smem:[#allocation0]]
  $region53: #{start2d_forward.3} parent=0
    _
  %s8 = ssub.s32 1, %s6
  %s9 = scalar_select 0, %s8, %s6
  loop: start=0, step=1, limit=4
  $region2: #{start2d_forward.3} parent=0 // loop_pre_header
    _
  $region3: #{start2d_forward.3} parent=0 // loop_header
    %s11 = sphi 0, %s15
    %p12 = scmp.ge.s32.totalorder %s11, 4
    %s21 = sphi 0, %s23
    %s24 = sphi 0, %s21
    %s25 = sphi 0, %s24
    %s41 = sphi 0, %s25
    %s45 = sphi 0, %s45
    %s47 = sphi 0, %s45
    %s48 = sphi 0, %s47
    %s62 = sphi 0, %s48
    %s66 = sphi 0, %s66
    %s68 = sphi 0, %s66
    %s69 = sphi 0, %s68
    %s83 = sphi 0, %s69
    %s87 = sphi 0, %s87
    %s89 = sphi 0, %s87
    %s90 = sphi 0, %s89
    %s104 = sphi 0, %s90
    %s108 = sphi 0, %s108
    %s110 = sphi 0, %s108
    %s111 = sphi 0, %s110
    %s125 = sphi 0, %s111
    %s131 = sphi 0, %s133
    %s134 = sphi 0, %s131
    %s135 = sphi 0, %s134
    %s151 = sphi 0, %s135
  $region4: #{start2d_forward.3} parent=0 // loop_header_branch
    %14 = sbr.rel (%p12) target = $region8
  $region5: #{start2d_forward.3} parent=0 // loop_body
    %s16 = ssub.s32 %s11, 1
    %s17 = ssub.s32 %s11, 2
    %s18 = sadd.s32 %s11, 1
    %s19 = ssub.s32 %s11, %s18
    %p20 = scmp.eq.s32.totalorder %s19, 0
    %s22 = sadd.s32 %s21, 1
    %s23 = scalar_select %p20, %s21, %s22
    %p26 = pneg %p20
    %p27 = scmp.eq.s32.totalorder %s11, 1
    %p28 = por %p26, %p27
    %p29 = scmp.ne.s32.totalorder %s21, %s24
    %p30 = scmp.eq.s32.totalorder %s11, 0
    %p31 = por %p29, %p30
    %p32 = scmp.ne.s32.totalorder %s21, %s24
    %p33 = scmp.eq.s32.totalorder %s16, 1
    %p34 = por %p32, %p33
    %p35 = scmp.ne.s32.totalorder %s24, %s25
    %p36 = scmp.eq.s32.totalorder %s16, 0
    %p37 = por %p35, %p36
    %p38 = scmp.ne.s32.totalorder %s24, %s25
    %p39 = scmp.eq.s32.totalorder %s17, 1
    %p40 = por %p38, %p39
    %p42 = scmp.ne.s32.totalorder %s25, %s41
    %p43 = scmp.eq.s32.totalorder %s17, 0
    %p44 = por %p42, %p43
    %s46 = sadd.s32 %s45, 1
    %p49 = scmp.eq.s32.totalorder %s11, 1
    %p50 = scmp.ne.s32.totalorder %s45, %s47
    %p51 = scmp.eq.s32.totalorder %s11, 0
    %p52 = por %p50, %p51
    %p53 = scmp.ne.s32.totalorder %s45, %s47
    %p54 = scmp.eq.s32.totalorder %s16, 1
    %p55 = por %p53, %p54
    %p56 = scmp.ne.s32.totalorder %s47, %s48
    %p57 = scmp.eq.s32.totalorder %s16, 0
    %p58 = por %p56, %p57
    %p59 = scmp.ne.s32.totalorder %s47, %s48
    %p60 = scmp.eq.s32.totalorder %s17, 1
    %p61 = por %p59, %p60
    %p63 = scmp.ne.s32.totalorder %s48, %s62
    %p64 = scmp.eq.s32.totalorder %s17, 0
    %p65 = por %p63, %p64
    %s67 = sadd.s32 %s66, 1
    %p70 = scmp.eq.s32.totalorder %s11, 1
    %p71 = scmp.ne.s32.totalorder %s66, %s68
    %p72 = scmp.eq.s32.totalorder %s11, 0
    %p73 = por %p71, %p72
    %p74 = scmp.ne.s32.totalorder %s66, %s68
    %p75 = scmp.eq.s32.totalorder %s16, 1
    %p76 = por %p74, %p75
    %p77 = scmp.ne.s32.totalorder %s68, %s69
    %p78 = scmp.eq.s32.totalorder %s16, 0
    %p79 = por %p77, %p78
    %p80 = scmp.ne.s32.totalorder %s68, %s69
    %p81 = scmp.eq.s32.totalorder %s17, 1
    %p82 = por %p80, %p81
    %p84 = scmp.ne.s32.totalorder %s69, %s83
    %p85 = scmp.eq.s32.totalorder %s17, 0
    %p86 = por %p84, %p85
    %s88 = sadd.s32 %s87, 1
    %p91 = scmp.eq.s32.totalorder %s11, 1
    %p92 = scmp.ne.s32.totalorder %s87, %s89
    %p93 = scmp.eq.s32.totalorder %s11, 0
    %p94 = por %p92, %p93
    %p95 = scmp.ne.s32.totalorder %s87, %s89
    %p96 = scmp.eq.s32.totalorder %s16, 1
    %p97 = por %p95, %p96
    %p98 = scmp.ne.s32.totalorder %s89, %s90
    %p99 = scmp.eq.s32.totalorder %s16, 0
    %p100 = por %p98, %p99
    %p101 = scmp.ne.s32.totalorder %s89, %s90
    %p102 = scmp.eq.s32.totalorder %s17, 1
    %p103 = por %p101, %p102
    %p105 = scmp.ne.s32.totalorder %s90, %s104
    %p106 = scmp.eq.s32.totalorder %s17, 0
    %p107 = por %p105, %p106
    %s109 = sadd.s32 %s108, 1
    %p112 = scmp.eq.s32.totalorder %s11, 1
    %p113 = scmp.ne.s32.totalorder %s108, %s110
    %p114 = scmp.eq.s32.totalorder %s11, 0
    %p115 = por %p113, %p114
    %p116 = scmp.ne.s32.totalorder %s108, %s110
    %p117 = scmp.eq.s32.totalorder %s16, 1
    %p118 = por %p116, %p117
    %p119 = scmp.ne.s32.totalorder %s110, %s111
    %p120 = scmp.eq.s32.totalorder %s16, 0
    %p121 = por %p119, %p120
    %p122 = scmp.ne.s32.totalorder %s110, %s111
    %p123 = scmp.eq.s32.totalorder %s17, 1
    %p124 = por %p122, %p123
    %p126 = scmp.ne.s32.totalorder %s111, %s125
    %p127 = scmp.eq.s32.totalorder %s17, 0
    %p128 = por %p126, %p127
    %s129 = ssub.s32 %s11, %s18
    %p130 = scmp.eq.s32.totalorder %s129, 0
    %s132 = sadd.s32 %s131, 1
    %s133 = scalar_select %p130, %s131, %s132
    %p136 = pneg %p130
    %p137 = scmp.eq.s32.totalorder %s11, 1
    %p138 = por %p136, %p137
    %p139 = scmp.ne.s32.totalorder %s131, %s134
    %p140 = scmp.eq.s32.totalorder %s11, 0
    %p141 = por %p139, %p140
    %p142 = scmp.ne.s32.totalorder %s131, %s134
    %p143 = scmp.eq.s32.totalorder %s16, 1
    %p144 = por %p142, %p143
    %p145 = scmp.ne.s32.totalorder %s134, %s135
    %p146 = scmp.eq.s32.totalorder %s16, 0
    %p147 = por %p145, %p146
    %p148 = scmp.ne.s32.totalorder %s134, %s135
    %p149 = scmp.eq.s32.totalorder %s17, 1
    %p150 = por %p148, %p149
    %p152 = scmp.ne.s32.totalorder %s135, %s151
    %p153 = scmp.eq.s32.totalorder %s17, 0
    %p154 = por %p152, %p153
    %p155 = scmp.le.s32.totalorder 1, %s11
    %p156 = scmp.lt.s32.totalorder %s11, 3
    %p157 = pnand %p155, %p156
    %p158 = pneg %p157
    // Predicated region
    $region9: #{start2d_forward.3} parent=5 // pred_check
      _
    $region10: #{start2d_forward.3} parent=5 // pred_check_branch
      %160 = sbr.rel (%p157) target = $region12
    $region11: #{start2d_forward.3} parent=5 // pred_region
      %s161 = ssub.s32 %s11, 1
      // Predicated region
      $region13: #{start2d_forward.3} parent=11 // pred_check
        %p162 = pneg %p58
      $region14: #{start2d_forward.3} parent=11 // pred_check_branch
        %164 = sbr.rel (%p162) target = $region16
      $region15: #{start2d_forward.3} parent=11 // pred_region
        _
      $region16: #{start2d_forward.3} parent=11 // pred_fallthru
        _
      // Predicated region
      $region17: #{start2d_forward.3} parent=11 // pred_check
        %p165 = pneg %p79
      $region18: #{start2d_forward.3} parent=11 // pred_check_branch
        %167 = sbr.rel (%p165) target = $region20
      $region19: #{start2d_forward.3} parent=11 // pred_region
        _
      $region20: #{start2d_forward.3} parent=11 // pred_fallthru
        _
      // Predicated region
      $region21: #{start2d_forward.3} parent=11 // pred_check
        %p168 = pneg %p100
      $region22: #{start2d_forward.3} parent=11 // pred_check_branch
        %170 = sbr.rel (%p168) target = $region24
      $region23: #{start2d_forward.3} parent=11 // pred_region
        _
      $region24: #{start2d_forward.3} parent=11 // pred_fallthru
        _
      // Predicated region
      $region25: #{start2d_forward.3} parent=11 // pred_check
        %p171 = pneg %p121
      $region26: #{start2d_forward.3} parent=11 // pred_check_branch
        %173 = sbr.rel (%p171) target = $region28
      $region27: #{start2d_forward.3} parent=11 // pred_region
        _
      $region28: #{start2d_forward.3} parent=11 // pred_fallthru
        _
    $region12: #{start2d_forward.3} parent=5 // pred_fallthru
      _
    %p174 = scmp.lt.s32.totalorder %s11, 2
    // Predicated region
    $region29: #{start2d_forward.3} parent=5 // pred_check
      %p175 = pneg %p174
    $region30: #{start2d_forward.3} parent=5 // pred_check_branch
      %177 = sbr.rel (%p175) target = $region32
    $region31: #{start2d_forward.3} parent=5 // pred_region
      // Predicated region
      $region33: #{start2d_forward.3} parent=31 // pred_check
        %p178 = pneg %p31
      $region34: #{start2d_forward.3} parent=31 // pred_check_branch
        %180 = sbr.rel (%p178) target = $region36
      $region35: #{start2d_forward.3} parent=31 // pred_region
        %p181 = scmp.lt.s32.totalorder %s11, 1
        %s182 = scalar_select %p181, %s11, 1
        %s183 = smul.addr %s182, 5
        %s184 = smul.addr %s183, 8
        %s185 = scalar_lea.vmem %s0, %s184
      $region36: #{start2d_forward.3} parent=31 // pred_fallthru
        _
    $region32: #{start2d_forward.3} parent=5 // pred_fallthru
      _
    %p186 = scmp.le.s32.totalorder 1, %s11
    %p187 = scmp.lt.s32.totalorder %s11, 3
    %p188 = pnand %p186, %p187
    %p189 = pneg %p188
    // Predicated region
    $region37: #{start2d_forward.3} parent=5 // pred_check
      _
    $region38: #{start2d_forward.3} parent=5 // pred_check_branch
      %191 = sbr.rel (%p188) target = $region40
    $region39: #{start2d_forward.3} parent=5 // pred_region
      %s192 = ssub.s32 %s11, 1
      %p193 = scmp.lt.s32.totalorder %s16, 1
      %s194 = scalar_select %p193, %s16, 1
      %s195 = smul.addr %s194, 5
      %s196 = smul.addr %s195, 8
      %s197 = scalar_lea.vmem %s0, %s196
      %p198 = pneg %p37
      %p199 = pneg %p34
      %p200 = pneg %p58
      %p201 = pneg %p55
      %p202 = pneg %p79
      %p203 = pneg %p76
      %p204 = pneg %p100
      %p205 = pneg %p97
      %p206 = pneg %p121
      %p207 = pneg %p118
      %p208 = pneg %p147
      %p209 = pneg %p144
      %p210 = scmp.lt.s32.totalorder %s16, 1
      %s211 = scalar_select %p210, %s16, 1
      %s212 = smul.addr %s211, 5
      %s213 = smul.addr %s212, 8
      %s214 = scalar_lea.vmem %s5, %s213
      %p215 = scmp.lt.s32.totalorder %s16, 1
      %s216 = scalar_select %p215, %s16, 1
      %s217 = smul.addr %s216, 5
      %s218 = smul.addr %s217, 8
      %s219 = scalar_lea.vmem %s0, %s218
      %p220 = scmp.lt.s32.totalorder %s16, 1
      %s221 = scalar_select %p220, %s16, 1
      %s222 = smul.addr %s221, 5
      %s223 = smul.addr %s222, 8
      %s224 = scalar_lea.vmem %s5, %s223
      %v225 = vld [vmem:[%s1] sm:$0x1]
      %v226 = vld [vmem:[%s1 + $0x1] sm:$0x1]
      %vm227 = vcmask 253952
      %v228 = vsel %vm227, %v225, 0.0
      %v229 = vsel %vm227, %v226, 0.0
      %v230 = vadd.f32 %v228, %v229
      %v231 = vld [vmem:[%s2] sm:$0x1]
      %v232 = vld [vmem:[%s2 + $0x1] sm:$0x1]
      %v233 = vsel %vm227, %v231, 0.0
      %v234 = vsel %vm227, %v232, 0.0
      %v235 = vadd.f32 %v233, %v234
      %v236 = vmul.f32 %v230, 0.013888889
      %v237 = vmul.f32 %v235, 0.013888889
      %v238 = vmul.f32 %v236, %v236
      %v239 = vsub.f32 %v237, %v238
      %v240 = vld [vmem:[%s3] sm:$0x1]
      %v241 = vadd.f32 %v239, 1e-05
      %v242 = vrsqrt.pop %v241
      %v243 = vmul.f32 %v242, %v241
      %v244 = vmul.f32 %v243, %v242
      %v245 = vmul.f32 0.5, %v244
      %v246 = vsub.f32 1.5, %v245
      %v247 = vmul.f32 %v242, %v246
      %vm248 = vweird.f32 %v241
      %vm249 = vweird.f32 %v242
      %vm250 = vmor %vm248, %vm249
      %v251 = vsel %vm250, %v242, %v247
      %v252 = vmul.f32 %v240, %v251
      %v253 = vld [vmem:[%s4] sm:$0x1]
      %v254 = vmul.f32 %v236, %v252
      %v255 = vsub.f32 %v253, %v254
      %v256 = vld [vmem:[%s219] sm:$0xff]
      %v257 = vld [vmem:[%s219 + $0x8] sm:$0xff]
      %v258 = vld [vmem:[%s219 + $0x10] sm:$0xff]
      %v259 = vld [vmem:[%s219 + $0x18] sm:$0xff]
      %v260 = vld [vmem:[%s219 + $0x20] sm:$0xf]
      %v262 = vperm.slane %v252, 0
      %v264 = vmul.f32 %v256, %v262
      %v265 = vmul.f32 %v257, %v262
      %v266 = vmul.f32 %v258, %v262
      %v267 = vmul.f32 %v259, %v262
      %v268 = vmul.f32 %v260, %v262
      %v270 = vperm.slane %v255, 0
      %v272 = vadd.f32 %v264, %v270
      %v273 = vadd.f32 %v265, %v270
      %v274 = vadd.f32 %v266, %v270
      %v275 = vadd.f32 %v267, %v270
      %v276 = vadd.f32 %v268, %v270
      %v277 = vmax.f32 %v272, 0.0
      %v278 = vmax.f32 %v273, 0.0
      %v279 = vmax.f32 %v274, 0.0
      %v280 = vmax.f32 %v275, 0.0
      %v281 = vmax.f32 %v276, 0.0
      %vm282 = vcmask 261120
      %283 = vst.msk [vmem:[%s224] sm:$0xff] %vm282, %v277
      %284 = vst.msk [vmem:[%s224 + $0x8] sm:$0xff] %vm282, %v278
      %285 = vst.msk [vmem:[%s224 + $0x10] sm:$0xff] %vm282, %v279
      %286 = vst.msk [vmem:[%s224 + $0x18] sm:$0xff] %vm282, %v280
      %vm287 = vcmask 257024
      %288 = vst.msk [vmem:[%s224 + $0x20] sm:$0xf] %vm287, %v281
      %p289 = scmp.lt.s32.totalorder %s16, 1
      %s290 = scalar_select %p289, %s16, 1
      %s291 = smul.addr %s290, 5
      %s292 = smul.addr %s291, 8
      %s293 = scalar_lea.vmem %s5, %s292
      // Predicated region
      $region41: #{start2d_forward.3} parent=39 // pred_check
        %p294 = pneg %p144
      $region42: #{start2d_forward.3} parent=39 // pred_check_branch
        %296 = sbr.rel (%p294) target = $region44
      $region43: #{start2d_forward.3} parent=39 // pred_region
        _
      $region44: #{start2d_forward.3} parent=39 // pred_fallthru
        _
    $region40: #{start2d_forward.3} parent=5 // pred_fallthru
      _
    %p297 = scmp.le.s32.totalorder 2, %s11
    // Predicated region
    $region45: #{start2d_forward.3} parent=5 // pred_check
      %p298 = pneg %p297
    $region46: #{start2d_forward.3} parent=5 // pred_check_branch
      %300 = sbr.rel (%p298) target = $region48
    $region47: #{start2d_forward.3} parent=5 // pred_region
      %s301 = ssub.s32 %s11, 2
      // Predicated region
      $region49: #{start2d_forward.3} parent=47 // pred_check
        %p302 = pneg %p150
      $region50: #{start2d_forward.3} parent=47 // pred_check_branch
        %304 = sbr.rel (%p302) target = $region52
      $region51: #{start2d_forward.3} parent=47 // pred_region
        %p305 = scmp.lt.s32.totalorder %s17, 1
        %s306 = scalar_select %p305, %s17, 1
        %s307 = smul.addr %s306, 5
        %s308 = smul.addr %s307, 8
        %s309 = scalar_lea.vmem %s5, %s308
      $region52: #{start2d_forward.3} parent=47 // pred_fallthru
        _
    $region48: #{start2d_forward.3} parent=5 // pred_fallthru
      _
  $region6: #{start2d_forward.3} parent=0 // loop_footer
    %s15 = sadd.s32 1, %s11
  $region7: #{start2d_forward.3} parent=0 // loop_footer_branch
    %10 = sbr.rel target = $region3
  $region8: #{start2d_forward.3} parent=0 // loop_exit
    _

// kernel: start2d_forward.2
$region0: #{start2d_forward.2}
  #allocation0 [shape = 'u32[]', space=smem, size = 0x4, offset = 0x4, fixed_abs, tag = 'smem constant byte address 0x4 - core index']
  #allocation1 [shape = 'u32[72,128]{1,0:T(1,128)}', space=vmem, size = 0x9000, scoped, tag = 'internal scratch']
  %s0 = inlined_call_operand.vmem [shape: f32[2,8,8,36], index: 0, kind: input, shape index: {}]
  %s1 = inlined_call_operand.vmem [shape: f32[3,3,36,32], index: 1, kind: input, shape index: {}]
  %s2 = inlined_call_operand.vmem [shape: f32[2,36,32], index: 2, kind: output, shape index: {0}]
  %s3 = inlined_call_operand.vmem [shape: f32[2,1,32], index: 3, kind: output, shape index: {1}]
  %s4 = inlined_call_operand.vmem [shape: f32[2,1,32], index: 4, kind: output, shape index: {2}]
  %5 = xla_tuple %s2, %s3, %s4
  %s6 = sld [smem:[#allocation0]]
  $region57: #{start2d_forward.2} parent=0
    _
  %s8 = ssub.s32 1, %s6
  %s9 = scalar_select 0, %s8, %s6
  loop: start=0, step=1, limit=4
  $region2: #{start2d_forward.2} parent=0 // loop_pre_header
    _
  $region3: #{start2d_forward.2} parent=0 // loop_header
    %s11 = sphi 0, %s15
    %p12 = scmp.ge.s32.totalorder %s11, 4
    %s21 = sphi 0, %s23
    %s24 = sphi 0, %s21
    %s25 = sphi 0, %s24
    %s41 = sphi 0, %s25
    %s45 = sphi 0, %s45
    %s47 = sphi 0, %s45
    %s48 = sphi 0, %s47
    %s62 = sphi 0, %s48
    %s68 = sphi 0, %s70
    %s71 = sphi 0, %s68
    %s72 = sphi 0, %s71
    %s88 = sphi 0, %s72
    %s94 = sphi 0, %s96
    %s97 = sphi 0, %s94
    %s98 = sphi 0, %s97
    %s114 = sphi 0, %s98
    %s120 = sphi 0, %s122
    %s123 = sphi 0, %s120
    %s124 = sphi 0, %s123
    %s140 = sphi 0, %s124
  $region4: #{start2d_forward.2} parent=0 // loop_header_branch
    %14 = sbr.rel (%p12) target = $region8
  $region5: #{start2d_forward.2} parent=0 // loop_body
    %s16 = ssub.s32 %s11, 1
    %s17 = ssub.s32 %s11, 2
    %s18 = sadd.s32 %s11, 1
    %s19 = ssub.s32 %s11, %s18
    %p20 = scmp.eq.s32.totalorder %s19, 0
    %s22 = sadd.s32 %s21, 1
    %s23 = scalar_select %p20, %s21, %s22
    %p26 = pneg %p20
    %p27 = scmp.eq.s32.totalorder %s11, 1
    %p28 = por %p26, %p27
    %p29 = scmp.ne.s32.totalorder %s21, %s24
    %p30 = scmp.eq.s32.totalorder %s11, 0
    %p31 = por %p29, %p30
    %p32 = scmp.ne.s32.totalorder %s21, %s24
    %p33 = scmp.eq.s32.totalorder %s16, 1
    %p34 = por %p32, %p33
    %p35 = scmp.ne.s32.totalorder %s24, %s25
    %p36 = scmp.eq.s32.totalorder %s16, 0
    %p37 = por %p35, %p36
    %p38 = scmp.ne.s32.totalorder %s24, %s25
    %p39 = scmp.eq.s32.totalorder %s17, 1
    %p40 = por %p38, %p39
    %p42 = scmp.ne.s32.totalorder %s25, %s41
    %p43 = scmp.eq.s32.totalorder %s17, 0
    %p44 = por %p42, %p43
    %s46 = sadd.s32 %s45, 1
    %p49 = scmp.eq.s32.totalorder %s11, 1
    %p50 = scmp.ne.s32.totalorder %s45, %s47
    %p51 = scmp.eq.s32.totalorder %s11, 0
    %p52 = por %p50, %p51
    %p53 = scmp.ne.s32.totalorder %s45, %s47
    %p54 = scmp.eq.s32.totalorder %s16, 1
    %p55 = por %p53, %p54
    %p56 = scmp.ne.s32.totalorder %s47, %s48
    %p57 = scmp.eq.s32.totalorder %s16, 0
    %p58 = por %p56, %p57
    %p59 = scmp.ne.s32.totalorder %s47, %s48
    %p60 = scmp.eq.s32.totalorder %s17, 1
    %p61 = por %p59, %p60
    %p63 = scmp.ne.s32.totalorder %s48, %s62
    %p64 = scmp.eq.s32.totalorder %s17, 0
    %p65 = por %p63, %p64
    %s66 = ssub.s32 %s11, %s18
    %p67 = scmp.eq.s32.totalorder %s66, 0
    %s69 = sadd.s32 %s68, 1
    %s70 = scalar_select %p67, %s68, %s69
    %p73 = pneg %p67
    %p74 = scmp.eq.s32.totalorder %s11, 1
    %p75 = por %p73, %p74
    %p76 = scmp.ne.s32.totalorder %s68, %s71
    %p77 = scmp.eq.s32.totalorder %s11, 0
    %p78 = por %p76, %p77
    %p79 = scmp.ne.s32.totalorder %s68, %s71
    %p80 = scmp.eq.s32.totalorder %s16, 1
    %p81 = por %p79, %p80
    %p82 = scmp.ne.s32.totalorder %s71, %s72
    %p83 = scmp.eq.s32.totalorder %s16, 0
    %p84 = por %p82, %p83
    %p85 = scmp.ne.s32.totalorder %s71, %s72
    %p86 = scmp.eq.s32.totalorder %s17, 1
    %p87 = por %p85, %p86
    %p89 = scmp.ne.s32.totalorder %s72, %s88
    %p90 = scmp.eq.s32.totalorder %s17, 0
    %p91 = por %p89, %p90
    %s92 = ssub.s32 %s11, %s18
    %p93 = scmp.eq.s32.totalorder %s92, 0
    %s95 = sadd.s32 %s94, 1
    %s96 = scalar_select %p93, %s94, %s95
    %p99 = pneg %p93
    %p100 = scmp.eq.s32.totalorder %s11, 1
    %p101 = por %p99, %p100
    %p102 = scmp.ne.s32.totalorder %s94, %s97
    %p103 = scmp.eq.s32.totalorder %s11, 0
    %p104 = por %p102, %p103
    %p105 = scmp.ne.s32.totalorder %s94, %s97
    %p106 = scmp.eq.s32.totalorder %s16, 1
    %p107 = por %p105, %p106
    %p108 = scmp.ne.s32.totalorder %s97, %s98
    %p109 = scmp.eq.s32.totalorder %s16, 0
    %p110 = por %p108, %p109
    %p111 = scmp.ne.s32.totalorder %s97, %s98
    %p112 = scmp.eq.s32.totalorder %s17, 1
    %p113 = por %p111, %p112
    %p115 = scmp.ne.s32.totalorder %s98, %s114
    %p116 = scmp.eq.s32.totalorder %s17, 0
    %p117 = por %p115, %p116
    %s118 = ssub.s32 %s11, %s18
    %p119 = scmp.eq.s32.totalorder %s118, 0
    %s121 = sadd.s32 %s120, 1
    %s122 = scalar_select %p119, %s120, %s121
    %p125 = pneg %p119
    %p126 = scmp.eq.s32.totalorder %s11, 1
    %p127 = por %p125, %p126
    %p128 = scmp.ne.s32.totalorder %s120, %s123
    %p129 = scmp.eq.s32.totalorder %s11, 0
    %p130 = por %p128, %p129
    %p131 = scmp.ne.s32.totalorder %s120, %s123
    %p132 = scmp.eq.s32.totalorder %s16, 1
    %p133 = por %p131, %p132
    %p134 = scmp.ne.s32.totalorder %s123, %s124
    %p135 = scmp.eq.s32.totalorder %s16, 0
    %p136 = por %p134, %p135
    %p137 = scmp.ne.s32.totalorder %s123, %s124
    %p138 = scmp.eq.s32.totalorder %s17, 1
    %p139 = por %p137, %p138
    %p141 = scmp.ne.s32.totalorder %s124, %s140
    %p142 = scmp.eq.s32.totalorder %s17, 0
    %p143 = por %p141, %p142
    %p144 = scmp.le.s32.totalorder 1, %s11
    %p145 = scmp.lt.s32.totalorder %s11, 3
    %p146 = pnand %p144, %p145
    %p147 = pneg %p146
    // Predicated region
    $region9: #{start2d_forward.2} parent=5 // pred_check
      _
    $region10: #{start2d_forward.2} parent=5 // pred_check_branch
      %149 = sbr.rel (%p146) target = $region12
    $region11: #{start2d_forward.2} parent=5 // pred_region
      %s150 = ssub.s32 %s11, 1
      // Predicated region
      $region13: #{start2d_forward.2} parent=11 // pred_check
        %p151 = pneg %p58
      $region14: #{start2d_forward.2} parent=11 // pred_check_branch
        %153 = sbr.rel (%p151) target = $region16
      $region15: #{start2d_forward.2} parent=11 // pred_region
        _
      $region16: #{start2d_forward.2} parent=11 // pred_fallthru
        _
    $region12: #{start2d_forward.2} parent=5 // pred_fallthru
      _
    %p154 = scmp.lt.s32.totalorder %s11, 2
    // Predicated region
    $region17: #{start2d_forward.2} parent=5 // pred_check
      %p155 = pneg %p154
    $region18: #{start2d_forward.2} parent=5 // pred_check_branch
      %157 = sbr.rel (%p155) target = $region20
    $region19: #{start2d_forward.2} parent=5 // pred_region
      // Predicated region
      $region21: #{start2d_forward.2} parent=19 // pred_check
        %p158 = pneg %p31
      $region22: #{start2d_forward.2} parent=19 // pred_check_branch
        %160 = sbr.rel (%p158) target = $region24
      $region23: #{start2d_forward.2} parent=19 // pred_region
        %p161 = scmp.lt.s32.totalorder %s11, 1
        %s162 = scalar_select %p161, %s11, 1
        %s163 = smul.addr %s162, 8
        %s164 = smul.addr %s163, 8
        %s165 = scalar_lea.vmem %s0, %s164
      $region24: #{start2d_forward.2} parent=19 // pred_fallthru
        _
    $region20: #{start2d_forward.2} parent=5 // pred_fallthru
      _
    %p166 = scmp.le.s32.totalorder 1, %s11
    %p167 = scmp.lt.s32.totalorder %s11, 3
    %p168 = pnand %p166, %p167
    %p169 = pneg %p168
    // Predicated region
    $region25: #{start2d_forward.2} parent=5 // pred_check
      _
    $region26: #{start2d_forward.2} parent=5 // pred_check_branch
      %171 = sbr.rel (%p168) target = $region28
    $region27: #{start2d_forward.2} parent=5 // pred_region
      %s172 = ssub.s32 %s11, 1
      %p173 = scmp.lt.s32.totalorder %s16, 1
      %s174 = scalar_select %p173, %s16, 1
      %s175 = smul.addr %s174, 8
      %s176 = smul.addr %s175, 8
      %s177 = scalar_lea.vmem %s0, %s176
      %p178 = pneg %p37
      %p179 = pneg %p34
      %p180 = pneg %p58
      %p181 = pneg %p55
      %p182 = pneg %p84
      %p183 = pneg %p81
      %p184 = scmp.lt.s32.totalorder %s16, 1
      %s185 = scalar_select %p184, %s16, 1
      %s186 = smul.addr %s185, 5
      %s187 = smul.addr %s186, 8
      %s188 = scalar_lea.vmem %s2, %s187
      %p189 = pneg %p110
      %p190 = pneg %p107
      %p191 = scmp.lt.s32.totalorder %s16, 1
      %s192 = scalar_select %p191, %s16, 1
      %s193 = scalar_lea.vmem %s3, %s192
      %p194 = pneg %p136
      %p195 = pneg %p133
      %p196 = scmp.lt.s32.totalorder %s16, 1
      %s197 = scalar_select %p196, %s16, 1
      %s198 = scalar_lea.vmem %s4, %s197
      %p199 = scmp.lt.s32.totalorder %s16, 1
      %s200 = scalar_select %p199, %s16, 1
      %s201 = smul.addr %s200, 8
      %s202 = smul.addr %s201, 8
      %s203 = scalar_lea.vmem %s0, %s202
      %p204 = scmp.lt.s32.totalorder %s16, 1
      %s205 = scalar_select %p204, %s16, 1
      %s206 = smul.addr %s205, 5
      %s207 = smul.addr %s206, 8
      %s208 = scalar_lea.vmem %s2, %s207
      %p209 = scmp.lt.s32.totalorder %s16, 1
      %s210 = scalar_select %p209, %s16, 1
      %s211 = scalar_lea.vmem %s3, %s210
      %p212 = scmp.lt.s32.totalorder %s16, 1
      %s213 = scalar_select %p212, %s16, 1
      %s214 = scalar_lea.vmem %s4, %s213
      %v215 = vld [vmem:[%s203] sm:$0xff]
      %v216 = vld [vmem:[%s203 + $0x8] sm:$0xff]
      %v217 = vld [vmem:[%s203 + $0x10] sm:$0xff]
      %v218 = vld [vmem:[%s203 + $0x18] sm:$0xff]
      %v219 = vld [vmem:[%s203 + $0x20] sm:$0xff]
      %v220 = vld [vmem:[%s203 + $0x28] sm:$0xff]
      %v221 = vld [vmem:[%s203 + $0x30] sm:$0xff]
      %v222 = vld [vmem:[%s203 + $0x38] sm:$0xff]
      %v229 = vrot.slane %v215, 2
      %v230 = vrot.slane %v215, 4
      %v231 = vrot.slane %v216, 2
      %v232 = vrot.slane %v216, 4
      %v233 = vrot.slane %v217, 2
      %v234 = vrot.slane %v217, 4
      %v235 = vrot.slane %v218, 2
      %v236 = vrot.slane %v218, 4
      %v237 = vrot.slane %v219, 2
      %v238 = vrot.slane %v219, 4
      %v239 = vrot.slane %v220, 2
      %v240 = vrot.slane %v220, 4
      %v241 = vld [vmem:[%s1] sm:$0xff]
      %v242 = vld [vmem:[%s1 + $0x8] sm:$0xff]
      %v243 = vld [vmem:[%s1 + $0x10] sm:$0xff]
      %v244 = vld [vmem:[%s1 + $0x18] sm:$0xff]
      %v245 = vld [vmem:[%s1 + $0x20] sm:$0xf]
      %v246 = vrot.slane %v215, 6
      %v247 = vrot.slane %v216, 6
      %v248 = vrot.slane %v217, 6
      %v249 = vrot.slane %v218, 6
      %v250 = vrot.slane %v219, 6
      %v251 = vrot.slane %v220, 6
      %vm252 = vcmask 1040384
      %vm253 = vcmask 1042434
      %vm254 = vmor %vm252, %vm253
      %vm255 = vcmask 1044484
      %vm256 = vmor %vm254, %vm255
      %vm257 = vcmask 1046534
      %vm258 = vmor %vm256, %vm257
      %v259 = vrot.slane %v215, 7
      %v260 = vrot.slane %v259, 2
      %v261 = vrot.slane %v229, 7
      %v262 = vsel %vm258, %v260, %v261
      %v263 = vrot.slane %v261, 2
      %v264 = vrot.slane %v230, 7
      %v265 = vsel %vm258, %v263, %v264
      %v266 = vrot.slane %v264, 2
      %v267 = vrot.slane %v246, 7
      %v268 = vsel %vm258, %v266, %v267
      %v269 = vrot.slane %v216, 7
      %v270 = vrot.slane %v269, 2
      %v271 = vrot.slane %v231, 7
      %v272 = vsel %vm258, %v270, %v271
      %v273 = vrot.slane %v271, 2
      %v274 = vrot.slane %v232, 7
      %v275 = vsel %vm258, %v273, %v274
      %v276 = vrot.slane %v274, 2
      %v277 = vrot.slane %v247, 7
      %v278 = vsel %vm258, %v276, %v277
      %v279 = vrot.slane %v217, 7
      %v280 = vrot.slane %v279, 2
      %v281 = vrot.slane %v233, 7
      %v282 = vsel %vm258, %v280, %v281
      %v283 = vrot.slane %v281, 2
      %v284 = vrot.slane %v234, 7
      %v285 = vsel %vm258, %v283, %v284
      %v286 = vrot.slane %v284, 2
      %v287 = vrot.slane %v248, 7
      %v288 = vsel %vm258, %v286, %v287
      %v289 = vrot.slane %v218, 7
      %v290 = vrot.slane %v289, 2
      %v291 = vrot.slane %v235, 7
      %v292 = vsel %vm258, %v290, %v291
      %v293 = vrot.slane %v291, 2
      %v294 = vrot.slane %v236, 7
      %v295 = vsel %vm258, %v293, %v294
      %v296 = vrot.slane %v294, 2
      %v297 = vrot.slane %v249, 7
      %v298 = vsel %vm258, %v296, %v297
      %v299 = vrot.slane %v219, 7
      %v300 = vrot.slane %v299, 2
      %v301 = vrot.slane %v237, 7
      %v302 = vsel %vm258, %v300, %v301
      %v303 = vrot.slane %v301, 2
      %v304 = vrot.slane %v238, 7
      %v305 = vsel %vm258, %v303, %v304
      %v306 = vrot.slane %v304, 2
      %v307 = vrot.slane %v250, 7
      %v308 = vsel %vm258, %v306, %v307
      %v309 = vrot.slane %v220, 7
      %v310 = vrot.slane %v309, 2
      %v311 = vrot.slane %v239, 7
      %v312 = vsel %vm258, %v310, %v311
      %v313 = vrot.slane %v311, 2
      %v314 = vrot.slane %v240, 7
      %v315 = vsel %vm258, %v313, %v314
      %v316 = vrot.slane %v314, 2
      %v317 = vrot.slane %v251, 7
      %v318 = vsel %vm258, %v316, %v317
      %s319 = scalar_lea.vmem %s1, 40
      %v320 = vld [vmem:[%s319] sm:$0xff]
      %v321 = vld [vmem:[%s319 + $0x8] sm:$0xff]
      %v322 = vld [vmem:[%s319 + $0x10] sm:$0xff]
      %v323 = vld [vmem:[%s319 + $0x18] sm:$0xff]
      %v324 = vld [vmem:[%s319 + $0x20] sm:$0xf]
      %325 = vst [vmem:[#allocation1] ss:$4 sm:$0xff] %v262
      %s326 = scalar_lea.vmem [#allocation1], 1
      %327 = vst [vmem:[%s326] ss:$4 sm:$0xff] %v265
      %s328 = scalar_lea.vmem [#allocation1], 2
      %329 = vst [vmem:[%s328] ss:$4 sm:$0xff] %v268
      %s330 = scalar_lea.vmem [#allocation1], 3
      %331 = vst [vmem:[%s330] ss:$4 sm:$0xff] %v272
      %s332 = scalar_lea.vmem [#allocation1], 32
      %333 = vst [vmem:[%s332] ss:$4 sm:$0xff] %v275
      %s334 = scalar_lea.vmem [#allocation1], 33
      %335 = vst [vmem:[%s334] ss:$4 sm:$0xff] %v278
      %s336 = scalar_lea.vmem [#allocation1], 34
      %337 = vst [vmem:[%s336] ss:$4 sm:$0xff] %v282
      %s338 = scalar_lea.vmem [#allocation1], 35
      %339 = vst [vmem:[%s338] ss:$4 sm:$0xff] %v285
      %v340 = vld.sshfl [vmem:[#allocation1] sm:$0xff pattern:$0x73625140]
      %v341 = vld.sshfl [vmem:[#allocation1 + $0x20] sm:$0xff pattern:$0x73625140]
      %342 = vst [vmem:[#allocation1] ss:$4 sm:$0xff] %v288
      %343 = vst [vmem:[%s326] ss:$4 sm:$0xff] %v292
      %344 = vst [vmem:[%s328] ss:$4 sm:$0xff] %v295
      %345 = vst [vmem:[%s330] ss:$4 sm:$0xff] %v298
      %346 = vst [vmem:[%s332] ss:$4 sm:$0xff] %v302
      %347 = vst [vmem:[%s334] ss:$4 sm:$0xff] %v305
      %348 = vst [vmem:[%s336] ss:$4 sm:$0xff] %v308
      %349 = vst [vmem:[%s338] ss:$4 sm:$0xff] %v312
      %v350 = vld.sshfl [vmem:[#allocation1] sm:$0xff pattern:$0x73625140]
      %v351 = vld.sshfl [vmem:[#allocation1 + $0x20] sm:$0xff pattern:$0x73625140]
      %352 = vst [vmem:[#allocation1] ss:$4 sm:$0xff] %v315
      %353 = vst [vmem:[%s326] ss:$4 sm:$0xff] %v318
      %v354 = vld.sshfl [vmem:[#allocation1] sm:$0xff pattern:$0x73625140]
      %vm355 = vcmask 293888
      %v356 = vsel %vm355, %v340, 0
      %v358 = vsel %vm355, %v341, 0
      %v360 = vsel %vm355, %v350, 0
      %v362 = vsel %vm355, %v351, 0
      %v364 = vsel %vm355, %v354, 0
      %vm366 = vcmask 1043456
      %v368 = vsel %vm366, %v324, 0
      %370 = vmatpush.msra.mxu0 0.0
      %371 = vmatpush.msra.mxu0 0.0
      %372 = vmatpush.msra.mxu0 0.0
      %373 = vmatpush.msra.mxu0 0.0
      %374 = vmatpush.msra.mxu0 0.0
      %375 = vmatpush.msra.mxu0 0.0
      %376 = vmatpush.msra.mxu0 0.0
      %377 = vmatpush.msra.mxu0 0.0
      %378 = vmatpush.msra.mxu0 0.0
      %379 = vmatpush.msra.mxu0 0.0
      %380 = vmatpush.msra.mxu0 0.0
      %381 = vmatpush.msra.mxu0 %v368
      %382 = vmatpush.msra.mxu0 %v323
      %383 = vmatpush.msra.mxu0 %v322
      %384 = vmatpush.msra.mxu0 %v321
      %385 = vmatpush.msra.mxu0 %v320
      %386 = vmatmul.f32.gmra.mxu0 %v356
      %v387 = vpop.f32.mrf.mxu0
      %v388 = vadd.f32 0.0, %v387
      %389 = vmatmul.f32.gmra.mxu0 %v358
      %v390 = vpop.f32.mrf.mxu0
      %v391 = vadd.f32 0.0, %v390
      %392 = vmatmul.f32.gmra.mxu0 %v360
      %v393 = vpop.f32.mrf.mxu0
      %v394 = vadd.f32 0.0, %v393
      %395 = vmatmul.f32.gmra.mxu0 %v362
      %v396 = vpop.f32.mrf.mxu0
      %v397 = vadd.f32 0.0, %v396
      %398 = vmatmul.f32.gmra.mxu0 %v364
      %v399 = vpop.f32.mrf.mxu0
      %v400 = vadd.f32 0.0, %v399
      %401 = vdwg.mxu0
      %402 = vst [vmem:[#allocation1] ss:$4 sm:$0xff] %v215
      %s403 = scalar_lea.vmem [#allocation1], 1
      %404 = vst [vmem:[%s403] ss:$4 sm:$0xff] %v229
      %s405 = scalar_lea.vmem [#allocation1], 2
      %406 = vst [vmem:[%s405] ss:$4 sm:$0xff] %v230
      %s407 = scalar_lea.vmem [#allocation1], 3
      %408 = vst [vmem:[%s407] ss:$4 sm:$0xff] %v216
      %s409 = scalar_lea.vmem [#allocation1], 32
      %410 = vst [vmem:[%s409] ss:$4 sm:$0xff] %v231
      %s411 = scalar_lea.vmem [#allocation1], 33
      %412 = vst [vmem:[%s411] ss:$4 sm:$0xff] %v232
      %s413 = scalar_lea.vmem [#allocation1], 34
      %414 = vst [vmem:[%s413] ss:$4 sm:$0xff] %v217
      %s415 = scalar_lea.vmem [#allocation1], 35
      %416 = vst [vmem:[%s415] ss:$4 sm:$0xff] %v233
      %v417 = vld.sshfl [vmem:[#allocation1] sm:$0xff pattern:$0x73625140]
      %v418 = vld.sshfl [vmem:[#allocation1 + $0x20] sm:$0xff pattern:$0x73625140]
      %419 = vst [vmem:[#allocation1] ss:$4 sm:$0xff] %v234
      %420 = vst [vmem:[%s403] ss:$4 sm:$0xff] %v218
      %421 = vst [vmem:[%s405] ss:$4 sm:$0xff] %v235
      %422 = vst [vmem:[%s407] ss:$4 sm:$0xff] %v236
      %423 = vst [vmem:[%s409] ss:$4 sm:$0xff] %v219
      %424 = vst [vmem:[%s411] ss:$4 sm:$0xff] %v237
      %425 = vst [vmem:[%s413] ss:$4 sm:$0xff] %v238
      %426 = vst [vmem:[%s415] ss:$4 sm:$0xff] %v220
      %v427 = vld.sshfl [vmem:[#allocation1] sm:$0xff pattern:$0x73625140]
      %v428 = vld.sshfl [vmem:[#allocation1 + $0x20] sm:$0xff pattern:$0x73625140]
      %429 = vst [vmem:[#allocation1] ss:$4 sm:$0xff] %v239
      %430 = vst [vmem:[%s403] ss:$4 sm:$0xff] %v240
      %v431 = vld.sshfl [vmem:[#allocation1] sm:$0xff pattern:$0x73625140]
      %v432 = vsel %vm355, %v417, 0
      %v434 = vsel %vm355, %v418, 0
      %v436 = vsel %vm355, %v427, 0
      %v438 = vsel %vm355, %v428, 0
      %v440 = vsel %vm355, %v431, 0
      %v443 = vsel %vm366, %v245, 0
      %445 = vmatpush.msra.mxu0 0.0
      %446 = vmatpush.msra.mxu0 0.0
      %447 = vmatpush.msra.mxu0 0.0
      %448 = vmatpush.msra.mxu0 0.0
      %449 = vmatpush.msra.mxu0 0.0
      %450 = vmatpush.msra.mxu0 0.0
      %451 = vmatpush.msra.mxu0 0.0
      %452 = vmatpush.msra.mxu0 0.0
      %453 = vmatpush.msra.mxu0 0.0
      %454 = vmatpush.msra.mxu0 0.0
      %455 = vmatpush.msra.mxu0 0.0
      %456 = vmatpush.msra.mxu0 %v443
      %457 = vmatpush.msra.mxu0 %v244
      %458 = vmatpush.msra.mxu0 %v243
      %459 = vmatpush.msra.mxu0 %v242
      %460 = vmatpush.msra.mxu0 %v241
      %461 = vmatmul.f32.gmra.mxu0 %v432
      %v462 = vpop.f32.mrf.mxu0
      %v463 = vadd.f32 %v388, %v462
      %464 = vmatmul.f32.gmra.mxu0 %v434
      %v465 = vpop.f32.mrf.mxu0
      %v466 = vadd.f32 %v391, %v465
      %467 = vmatmul.f32.gmra.mxu0 %v436
      %v468 = vpop.f32.mrf.mxu0
      %v469 = vadd.f32 %v394, %v468
      %470 = vmatmul.f32.gmra.mxu0 %v438
      %v471 = vpop.f32.mrf.mxu0
      %v472 = vadd.f32 %v397, %v471
      %473 = vmatmul.f32.gmra.mxu0 %v440
      %v474 = vpop.f32.mrf.mxu0
      %v475 = vadd.f32 %v400, %v474
      %476 = vdwg.mxu0
      %477 = vst.sshfl [vmem:[#allocation1] sm:$0xff pattern:$0x73625140] %v215
      %s478 = scalar_lea.vmem [#allocation1], 1
      %v479 = vld [vmem:[%s478] ss:$4 sm:$0xff]
      %s480 = scalar_lea.vmem [#allocation1], 2
      %v481 = vld [vmem:[%s480] ss:$4 sm:$0xff]
      %s482 = scalar_lea.vmem [#allocation1], 3
      %v483 = vld [vmem:[%s482] ss:$4 sm:$0xff]
      %484 = vst.sshfl [vmem:[#allocation1 + $0x20] sm:$0xff pattern:$0x73625140] %v216
      %s485 = scalar_lea.vmem [#allocation1], 33
      %v486 = vld [vmem:[%s485] ss:$4 sm:$0xff]
      %s487 = scalar_lea.vmem [#allocation1], 34
      %v488 = vld [vmem:[%s487] ss:$4 sm:$0xff]
      %s489 = scalar_lea.vmem [#allocation1], 35
      %v490 = vld [vmem:[%s489] ss:$4 sm:$0xff]
      %491 = vst.sshfl [vmem:[#allocation1] sm:$0xff pattern:$0x73625140] %v217
      %v492 = vld [vmem:[%s478] ss:$4 sm:$0xff]
      %v493 = vld [vmem:[%s480] ss:$4 sm:$0xff]
      %v494 = vld [vmem:[%s482] ss:$4 sm:$0xff]
      %495 = vst.sshfl [vmem:[#allocation1 + $0x20] sm:$0xff pattern:$0x73625140] %v218
      %v496 = vld [vmem:[%s485] ss:$4 sm:$0xff]
      %v497 = vld [vmem:[%s487] ss:$4 sm:$0xff]
      %v498 = vld [vmem:[%s489] ss:$4 sm:$0xff]
      %499 = vst.sshfl [vmem:[#allocation1] sm:$0xff pattern:$0x73625140] %v219
      %v500 = vld [vmem:[%s478] ss:$4 sm:$0xff]
      %v501 = vld [vmem:[%s480] ss:$4 sm:$0xff]
      %v502 = vld [vmem:[%s482] ss:$4 sm:$0xff]
      %503 = vst.sshfl [vmem:[#allocation1 + $0x20] sm:$0xff pattern:$0x73625140] %v220
      %v504 = vld [vmem:[%s485] ss:$4 sm:$0xff]
      %v505 = vld [vmem:[%s487] ss:$4 sm:$0xff]
      %v506 = vld [vmem:[%s489] ss:$4 sm:$0xff]
      %s507 = scalar_lea.vmem %s1, 80
      %v508 = vld [vmem:[%s507] sm:$0xff]
      %v509 = vld [vmem:[%s507 + $0x8] sm:$0xff]
      %v510 = vld [vmem:[%s507 + $0x10] sm:$0xff]
      %v511 = vld [vmem:[%s507 + $0x18] sm:$0xff]
      %v512 = vld [vmem:[%s507 + $0x20] sm:$0xf]
      %513 = vst [vmem:[#allocation1] ss:$4 sm:$0xff] %v479
      %s514 = scalar_lea.vmem [#allocation1], 1
      %515 = vst [vmem:[%s514] ss:$4 sm:$0xff] %v481
      %s516 = scalar_lea.vmem [#allocation1], 2
      %517 = vst [vmem:[%s516] ss:$4 sm:$0xff] %v483
      %s518 = scalar_lea.vmem [#allocation1], 3
      %519 = vst [vmem:[%s518] ss:$4 sm:$0xff] %v486
      %s520 = scalar_lea.vmem [#allocation1], 32
      %521 = vst [vmem:[%s520] ss:$4 sm:$0xff] %v488
      %s522 = scalar_lea.vmem [#allocation1], 33
      %523 = vst [vmem:[%s522] ss:$4 sm:$0xff] %v490
      %s524 = scalar_lea.vmem [#allocation1], 34
      %525 = vst [vmem:[%s524] ss:$4 sm:$0xff] %v492
      %s526 = scalar_lea.vmem [#allocation1], 35
      %527 = vst [vmem:[%s526] ss:$4 sm:$0xff] %v493
      %v528 = vld.sshfl [vmem:[#allocation1] sm:$0xff pattern:$0x73625140]
      %v529 = vld.sshfl [vmem:[#allocation1 + $0x20] sm:$0xff pattern:$0x73625140]
      %530 = vst [vmem:[#allocation1] ss:$4 sm:$0xff] %v494
      %531 = vst [vmem:[%s514] ss:$4 sm:$0xff] %v496
      %532 = vst [vmem:[%s516] ss:$4 sm:$0xff] %v497
      %533 = vst [vmem:[%s518] ss:$4 sm:$0xff] %v498
      %534 = vst [vmem:[%s520] ss:$4 sm:$0xff] %v500
      %535 = vst [vmem:[%s522] ss:$4 sm:$0xff] %v501
      %536 = vst [vmem:[%s524] ss:$4 sm:$0xff] %v502
      %537 = vst [vmem:[%s526] ss:$4 sm:$0xff] %v504
      %v538 = vld.sshfl [vmem:[#allocation1] sm:$0xff pattern:$0x73625140]
      %v539 = vld.sshfl [vmem:[#allocation1 + $0x20] sm:$0xff pattern:$0x73625140]
      %540 = vst [vmem:[#allocation1] ss:$4 sm:$0xff] %v505
      %541 = vst [vmem:[%s514] ss:$4 sm:$0xff] %v506
      %v542 = vld.sshfl [vmem:[#allocation1] sm:$0xff pattern:$0x73625140]
      %v543 = vsel %vm355, %v528, 0
      %v545 = vsel %vm355, %v529, 0
      %v547 = vsel %vm355, %v538, 0
      %v549 = vsel %vm355, %v539, 0
      %v551 = vsel %vm355, %v542, 0
      %v554 = vsel %vm366, %v512, 0
      %556 = vmatpush.msra.mxu0 0.0
      %557 = vmatpush.msra.mxu0 0.0
      %558 = vmatpush.msra.mxu0 0.0
      %559 = vmatpush.msra.mxu0 0.0
      %560 = vmatpush.msra.mxu0 0.0
      %561 = vmatpush.msra.mxu0 0.0
      %562 = vmatpush.msra.mxu0 0.0
      %563 = vmatpush.msra.mxu0 0.0
      %564 = vmatpush.msra.mxu0 0.0
      %565 = vmatpush.msra.mxu0 0.0
      %566 = vmatpush.msra.mxu0 0.0
      %567 = vmatpush.msra.mxu0 %v554
      %568 = vmatpush.msra.mxu0 %v511
      %569 = vmatpush.msra.mxu0 %v510
      %570 = vmatpush.msra.mxu0 %v509
      %571 = vmatpush.msra.mxu0 %v508
      %572 = vmatmul.f32.gmra.mxu0 %v543
      %v573 = vpop.f32.mrf.mxu0
      %v574 = vadd.f32 0.0, %v573
      %575 = vmatmul.f32.gmra.mxu0 %v545
      %v576 = vpop.f32.mrf.mxu0
      %v577 = vadd.f32 0.0, %v576
      %578 = vmatmul.f32.gmra.mxu0 %v547
      %v579 = vpop.f32.mrf.mxu0
      %v580 = vadd.f32 0.0, %v579
      %581 = vmatmul.f32.gmra.mxu0 %v549
      %v582 = vpop.f32.mrf.mxu0
      %v583 = vadd.f32 0.0, %v582
      %584 = vmatmul.f32.gmra.mxu0 %v551
      %v585 = vpop.f32.mrf.mxu0
      %v586 = vadd.f32 0.0, %v585
      %587 = vdwg.mxu0
      %v588 = vadd.f32 %v463, %v574
      %v589 = vadd.f32 %v466, %v577
      %v590 = vadd.f32 %v469, %v580
      %v591 = vadd.f32 %v472, %v583
      %v592 = vadd.f32 %v475, %v586
      %v594 = vrot.slane %v221, 2
      %v595 = vrot.slane %v221, 4
      %s596 = scalar_lea.vmem %s1, 120
      %v597 = vld [vmem:[%s596] sm:$0xff]
      %v598 = vld [vmem:[%s596 + $0x8] sm:$0xff]
      %v599 = vld [vmem:[%s596 + $0x10] sm:$0xff]
      %v600 = vld [vmem:[%s596 + $0x18] sm:$0xff]
      %v601 = vld [vmem:[%s596 + $0x20] sm:$0xf]
      %602 = vst [vmem:[#allocation1] ss:$4 sm:$0xff] %v216
      %s603 = scalar_lea.vmem [#allocation1], 1
      %604 = vst [vmem:[%s603] ss:$4 sm:$0xff] %v231
      %s605 = scalar_lea.vmem [#allocation1], 2
      %606 = vst [vmem:[%s605] ss:$4 sm:$0xff] %v232
      %s607 = scalar_lea.vmem [#allocation1], 3
      %608 = vst [vmem:[%s607] ss:$4 sm:$0xff] %v217
      %s609 = scalar_lea.vmem [#allocation1], 32
      %610 = vst [vmem:[%s609] ss:$4 sm:$0xff] %v233
      %s611 = scalar_lea.vmem [#allocation1], 33
      %612 = vst [vmem:[%s611] ss:$4 sm:$0xff] %v234
      %s613 = scalar_lea.vmem [#allocation1], 34
      %614 = vst [vmem:[%s613] ss:$4 sm:$0xff] %v218
      %s615 = scalar_lea.vmem [#allocation1], 35
      %616 = vst [vmem:[%s615] ss:$4 sm:$0xff] %v235
      %v617 = vld.sshfl [vmem:[#allocation1] sm:$0xff pattern:$0x73625140]
      %v618 = vld.sshfl [vmem:[#allocation1 + $0x20] sm:$0xff pattern:$0x73625140]
      %619 = vst [vmem:[#allocation1] ss:$4 sm:$0xff] %v236
      %620 = vst [vmem:[%s603] ss:$4 sm:$0xff] %v219
      %621 = vst [vmem:[%s605] ss:$4 sm:$0xff] %v237
      %622 = vst [vmem:[%s607] ss:$4 sm:$0xff] %v238
      %623 = vst [vmem:[%s609] ss:$4 sm:$0xff] %v220
      %624 = vst [vmem:[%s611] ss:$4 sm:$0xff] %v239
      %625 = vst [vmem:[%s613] ss:$4 sm:$0xff] %v240
      %626 = vst [vmem:[%s615] ss:$4 sm:$0xff] %v221
      %v627 = vld.sshfl [vmem:[#allocation1] sm:$0xff pattern:$0x73625140]
      %v628 = vld.sshfl [vmem:[#allocation1 + $0x20] sm:$0xff pattern:$0x73625140]
      %629 = vst [vmem:[#allocation1] ss:$4 sm:$0xff] %v594
      %630 = vst [vmem:[%s603] ss:$4 sm:$0xff] %v595
      %v631 = vld.sshfl [vmem:[#allocation1] sm:$0xff pattern:$0x73625140]
      %v632 = vsel %vm355, %v617, 0
      %v634 = vsel %vm355, %v618, 0
      %v636 = vsel %vm355, %v627, 0
      %v638 = vsel %vm355, %v628, 0
      %v640 = vsel %vm355, %v631, 0
      %v643 = vsel %vm366, %v601, 0
      %645 = vmatpush.msra.mxu0 0.0
      %646 = vmatpush.msra.mxu0 0.0
      %647 = vmatpush.msra.mxu0 0.0
      %648 = vmatpush.msra.mxu0 0.0
      %649 = vmatpush.msra.mxu0 0.0
      %650 = vmatpush.msra.mxu0 0.0
      %651 = vmatpush.msra.mxu0 0.0
      %652 = vmatpush.msra.mxu0 0.0
      %653 = vmatpush.msra.mxu0 0.0
      %654 = vmatpush.msra.mxu0 0.0
      %655 = vmatpush.msra.mxu0 0.0
      %656 = vmatpush.msra.mxu0 %v643
      %657 = vmatpush.msra.mxu0 %v600
      %658 = vmatpush.msra.mxu0 %v599
      %659 = vmatpush.msra.mxu0 %v598
      %660 = vmatpush.msra.mxu0 %v597
      %661 = vmatmul.f32.gmra.mxu0 %v632
      %v662 = vpop.f32.mrf.mxu0
      %v663 = vadd.f32 0.0, %v662
      %664 = vmatmul.f32.gmra.mxu0 %v634
      %v665 = vpop.f32.mrf.mxu0
      %v666 = vadd.f32 0.0, %v665
      %667 = vmatmul.f32.gmra.mxu0 %v636
      %v668 = vpop.f32.mrf.mxu0
      %v669 = vadd.f32 0.0, %v668
      %670 = vmatmul.f32.gmra.mxu0 %v638
      %v671 = vpop.f32.mrf.mxu0
      %v672 = vadd.f32 0.0, %v671
      %673 = vmatmul.f32.gmra.mxu0 %v640
      %v674 = vpop.f32.mrf.mxu0
      %v675 = vadd.f32 0.0, %v674
      %676 = vdwg.mxu0
      %v677 = vadd.f32 %v588, %v663
      %v678 = vadd.f32 %v589, %v666
      %v679 = vadd.f32 %v590, %v669
      %v680 = vadd.f32 %v591, %v672
      %v681 = vadd.f32 %v592, %v675
      %v682 = vrot.slane %v221, 6
      %v683 = vrot.slane %v221, 7
      %v684 = vrot.slane %v683, 2
      %v685 = vrot.slane %v594, 7
      %v686 = vsel %vm258, %v684, %v685
      %v687 = vrot.slane %v685, 2
      %v688 = vrot.slane %v595, 7
      %v689 = vsel %vm258, %v687, %v688
      %v690 = vrot.slane %v688, 2
      %v691 = vrot.slane %v682, 7
      %v692 = vsel %vm258, %v690, %v691
      %s693 = scalar_lea.vmem %s1, 160
      %v694 = vld [vmem:[%s693] sm:$0xff]
      %v695 = vld [vmem:[%s693 + $0x8] sm:$0xff]
      %v696 = vld [vmem:[%s693 + $0x10] sm:$0xff]
      %v697 = vld [vmem:[%s693 + $0x18] sm:$0xff]
      %v698 = vld [vmem:[%s693 + $0x20] sm:$0xf]
      %699 = vst [vmem:[#allocation1] ss:$4 sm:$0xff] %v272
      %s700 = scalar_lea.vmem [#allocation1], 1
      %701 = vst [vmem:[%s700] ss:$4 sm:$0xff] %v275
      %s702 = scalar_lea.vmem [#allocation1], 2
      %703 = vst [vmem:[%s702] ss:$4 sm:$0xff] %v278
      %s704 = scalar_lea.vmem [#allocation1], 3
      %705 = vst [vmem:[%s704] ss:$4 sm:$0xff] %v282
      %s706 = scalar_lea.vmem [#allocation1], 32
      %707 = vst [vmem:[%s706] ss:$4 sm:$0xff] %v285
      %s708 = scalar_lea.vmem [#allocation1], 33
      %709 = vst [vmem:[%s708] ss:$4 sm:$0xff] %v288
      %s710 = scalar_lea.vmem [#allocation1], 34
      %711 = vst [vmem:[%s710] ss:$4 sm:$0xff] %v292
      %s712 = scalar_lea.vmem [#allocation1], 35
      %713 = vst [vmem:[%s712] ss:$4 sm:$0xff] %v295
      %v714 = vld.sshfl [vmem:[#allocation1] sm:$0xff pattern:$0x73625140]
      %v715 = vld.sshfl [vmem:[#allocation1 + $0x20] sm:$0xff pattern:$0x73625140]
      %716 = vst [vmem:[#allocation1] ss:$4 sm:$0xff] %v298
      %717 = vst [vmem:[%s700] ss:$4 sm:$0xff] %v302
      %718 = vst [vmem:[%s702] ss:$4 sm:$0xff] %v305
      %719 = vst [vmem:[%s704] ss:$4 sm:$0xff] %v308
      %720 = vst [vmem:[%s706] ss:$4 sm:$0xff] %v312
      %721 = vst [vmem:[%s708] ss:$4 sm:$0xff] %v315
      %722 = vst [vmem:[%s710] ss:$4 sm:$0xff] %v318
      %723 = vst [vmem:[%s712] ss:$4 sm:$0xff] %v686
      %v724 = vld.sshfl [vmem:[#allocation1] sm:$0xff pattern:$0x73625140]
      %v725 = vld.sshfl [vmem:[#allocation1 + $0x20] sm:$0xff pattern:$0x73625140]
      %726 = vst [vmem:[#allocation1] ss:$4 sm:$0xff] %v689
      %727 = vst [vmem:[%s700] ss:$4 sm:$0xff] %v692
      %v728 = vld.sshfl [vmem:[#allocation1] sm:$0xff pattern:$0x73625140]
      %v729 = vsel %vm355, %v714, 0
      %v731 = vsel %vm355, %v715, 0
      %v733 = vsel %vm355, %v724, 0
      %v735 = vsel %vm355, %v725, 0
      %v737 = vsel %vm355, %v728, 0
      %v740 = vsel %vm366, %v698, 0
      %742 = vmatpush.msra.mxu0 0.0
      %743 = vmatpush.msra.mxu0 0.0
      %744 = vmatpush.msra.mxu0 0.0
      %745 = vmatpush.msra.mxu0 0.0
      %746 = vmatpush.msra.mxu0 0.0
      %747 = vmatpush.msra.mxu0 0.0
      %748 = vmatpush.msra.mxu0 0.0
      %749 = vmatpush.msra.mxu0 0.0
      %750 = vmatpush.msra.mxu0 0.0
      %751 = vmatpush.msra.mxu0 0.0
      %752 = vmatpush.msra.mxu0 0.0
      %753 = vmatpush.msra.mxu0 %v740
      %754 = vmatpush.msra.mxu0 %v697
      %755 = vmatpush.msra.mxu0 %v696
      %756 = vmatpush.msra.mxu0 %v695
      %757 = vmatpush.msra.mxu0 %v694
      %758 = vmatmul.f32.gmra.mxu0 %v729
      %v759 = vpop.f32.mrf.mxu0
      %v760 = vadd.f32 0.0, %v759
      %761 = vmatmul.f32.gmra.mxu0 %v731
      %v762 = vpop.f32.mrf.mxu0
      %v763 = vadd.f32 0.0, %v762
      %764 = vmatmul.f32.gmra.mxu0 %v733
      %v765 = vpop.f32.mrf.mxu0
      %v766 = vadd.f32 0.0, %v765
      %767 = vmatmul.f32.gmra.mxu0 %v735
      %v768 = vpop.f32.mrf.mxu0
      %v769 = vadd.f32 0.0, %v768
      %770 = vmatmul.f32.gmra.mxu0 %v737
      %v771 = vpop.f32.mrf.mxu0
      %v772 = vadd.f32 0.0, %v771
      %773 = vdwg.mxu0
      %v774 = vadd.f32 %v677, %v760
      %v775 = vadd.f32 %v678, %v763
      %v776 = vadd.f32 %v679, %v766
      %v777 = vadd.f32 %v680, %v769
      %v778 = vadd.f32 %v681, %v772
      %779 = vst.sshfl [vmem:[#allocation1] sm:$0xff pattern:$0x73625140] %v216
      %s780 = scalar_lea.vmem [#allocation1], 1
      %v781 = vld [vmem:[%s780] ss:$4 sm:$0xff]
      %s782 = scalar_lea.vmem [#allocation1], 2
      %v783 = vld [vmem:[%s782] ss:$4 sm:$0xff]
      %s784 = scalar_lea.vmem [#allocation1], 3
      %v785 = vld [vmem:[%s784] ss:$4 sm:$0xff]
      %786 = vst.sshfl [vmem:[#allocation1 + $0x20] sm:$0xff pattern:$0x73625140] %v217
      %s787 = scalar_lea.vmem [#allocation1], 33
      %v788 = vld [vmem:[%s787] ss:$4 sm:$0xff]
      %s789 = scalar_lea.vmem [#allocation1], 34
      %v790 = vld [vmem:[%s789] ss:$4 sm:$0xff]
      %s791 = scalar_lea.vmem [#allocation1], 35
      %v792 = vld [vmem:[%s791] ss:$4 sm:$0xff]
      %793 = vst.sshfl [vmem:[#allocation1] sm:$0xff pattern:$0x73625140] %v218
      %v794 = vld [vmem:[%s780] ss:$4 sm:$0xff]
      %v795 = vld [vmem:[%s782] ss:$4 sm:$0xff]
      %v796 = vld [vmem:[%s784] ss:$4 sm:$0xff]
      %797 = vst.sshfl [vmem:[#allocation1 + $0x20] sm:$0xff pattern:$0x73625140] %v219
      %v798 = vld [vmem:[%s787] ss:$4 sm:$0xff]
      %v799 = vld [vmem:[%s789] ss:$4 sm:$0xff]
      %v800 = vld [vmem:[%s791] ss:$4 sm:$0xff]
      %801 = vst.sshfl [vmem:[#allocation1] sm:$0xff pattern:$0x73625140] %v220
      %v802 = vld [vmem:[%s780] ss:$4 sm:$0xff]
      %v803 = vld [vmem:[%s782] ss:$4 sm:$0xff]
      %v804 = vld [vmem:[%s784] ss:$4 sm:$0xff]
      %805 = vst.sshfl [vmem:[#allocation1 + $0x20] sm:$0xff pattern:$0x73625140] %v221
      %v806 = vld [vmem:[%s787] ss:$4 sm:$0xff]
      %v807 = vld [vmem:[%s789] ss:$4 sm:$0xff]
      %v808 = vld [vmem:[%s791] ss:$4 sm:$0xff]
      %s809 = scalar_lea.vmem %s1, 200
      %v810 = vld [vmem:[%s809] sm:$0xff]
      %v811 = vld [vmem:[%s809 + $0x8] sm:$0xff]
      %v812 = vld [vmem:[%s809 + $0x10] sm:$0xff]
      %v813 = vld [vmem:[%s809 + $0x18] sm:$0xff]
      %v814 = vld [vmem:[%s809 + $0x20] sm:$0xf]
      %815 = vst [vmem:[#allocation1] ss:$4 sm:$0xff] %v781
      %s816 = scalar_lea.vmem [#allocation1], 1
      %817 = vst [vmem:[%s816] ss:$4 sm:$0xff] %v783
      %s818 = scalar_lea.vmem [#allocation1], 2
      %819 = vst [vmem:[%s818] ss:$4 sm:$0xff] %v785
      %s820 = scalar_lea.vmem [#allocation1], 3
      %821 = vst [vmem:[%s820] ss:$4 sm:$0xff] %v788
      %s822 = scalar_lea.vmem [#allocation1], 32
      %823 = vst [vmem:[%s822] ss:$4 sm:$0xff] %v790
      %s824 = scalar_lea.vmem [#allocation1], 33
      %825 = vst [vmem:[%s824] ss:$4 sm:$0xff] %v792
      %s826 = scalar_lea.vmem [#allocation1], 34
      %827 = vst [vmem:[%s826] ss:$4 sm:$0xff] %v794
      %s828 = scalar_lea.vmem [#allocation1], 35
      %829 = vst [vmem:[%s828] ss:$4 sm:$0xff] %v795
      %v830 = vld.sshfl [vmem:[#allocation1] sm:$0xff pattern:$0x73625140]
      %v831 = vld.sshfl [vmem:[#allocation1 + $0x20] sm:$0xff pattern:$0x73625140]
      %832 = vst [vmem:[#allocation1] ss:$4 sm:$0xff] %v796
      %833 = vst [vmem:[%s816] ss:$4 sm:$0xff] %v798
      %834 = vst [vmem:[%s818] ss:$4 sm:$0xff] %v799
      %835 = vst [vmem:[%s820] ss:$4 sm:$0xff] %v800
      %836 = vst [vmem:[%s822] ss:$4 sm:$0xff] %v802
      %837 = vst [vmem:[%s824] ss:$4 sm:$0xff] %v803
      %838 = vst [vmem:[%s826] ss:$4 sm:$0xff] %v804
      %839 = vst [vmem:[%s828] ss:$4 sm:$0xff] %v806
      %v840 = vld.sshfl [vmem:[#allocation1] sm:$0xff pattern:$0x73625140]
      %v841 = vld.sshfl [vmem:[#allocation1 + $0x20] sm:$0xff pattern:$0x73625140]
      %842 = vst [vmem:[#allocation1] ss:$4 sm:$0xff] %v807
      %843 = vst [vmem:[%s816] ss:$4 sm:$0xff] %v808
      %v844 = vld.sshfl [vmem:[#allocation1] sm:$0xff pattern:$0x73625140]
      %v845 = vsel %vm355, %v830, 0
      %v847 = vsel %vm355, %v831, 0
      %v849 = vsel %vm355, %v840, 0
      %v851 = vsel %vm355, %v841, 0
      %v853 = vsel %vm355, %v844, 0
      %v856 = vsel %vm366, %v814, 0
      %858 = vmatpush.msra.mxu0 0.0
      %859 = vmatpush.msra.mxu0 0.0
      %860 = vmatpush.msra.mxu0 0.0
      %861 = vmatpush.msra.mxu0 0.0
      %862 = vmatpush.msra.mxu0 0.0
      %863 = vmatpush.msra.mxu0 0.0
      %864 = vmatpush.msra.mxu0 0.0
      %865 = vmatpush.msra.mxu0 0.0
      %866 = vmatpush.msra.mxu0 0.0
      %867 = vmatpush.msra.mxu0 0.0
      %868 = vmatpush.msra.mxu0 0.0
      %869 = vmatpush.msra.mxu0 %v856
      %870 = vmatpush.msra.mxu0 %v813
      %871 = vmatpush.msra.mxu0 %v812
      %872 = vmatpush.msra.mxu0 %v811
      %873 = vmatpush.msra.mxu0 %v810
      %874 = vmatmul.f32.gmra.mxu0 %v845
      %v875 = vpop.f32.mrf.mxu0
      %v876 = vadd.f32 0.0, %v875
      %877 = vmatmul.f32.gmra.mxu0 %v847
      %v878 = vpop.f32.mrf.mxu0
      %v879 = vadd.f32 0.0, %v878
      %880 = vmatmul.f32.gmra.mxu0 %v849
      %v881 = vpop.f32.mrf.mxu0
      %v882 = vadd.f32 0.0, %v881
      %883 = vmatmul.f32.gmra.mxu0 %v851
      %v884 = vpop.f32.mrf.mxu0
      %v885 = vadd.f32 0.0, %v884
      %886 = vmatmul.f32.gmra.mxu0 %v853
      %v887 = vpop.f32.mrf.mxu0
      %v888 = vadd.f32 0.0, %v887
      %889 = vdwg.mxu0
      %v890 = vadd.f32 %v774, %v876
      %v891 = vadd.f32 %v775, %v879
      %v892 = vadd.f32 %v776, %v882
      %v893 = vadd.f32 %v777, %v885
      %v894 = vadd.f32 %v778, %v888
      %v896 = vrot.slane %v222, 2
      %v897 = vrot.slane %v222, 4
      %s898 = scalar_lea.vmem %s1, 240
      %v899 = vld [vmem:[%s898] sm:$0xff]
      %v900 = vld [vmem:[%s898 + $0x8] sm:$0xff]
      %v901 = vld [vmem:[%s898 + $0x10] sm:$0xff]
      %v902 = vld [vmem:[%s898 + $0x18] sm:$0xff]
      %v903 = vld [vmem:[%s898 + $0x20] sm:$0xf]
      %904 = vst [vmem:[#allocation1] ss:$4 sm:$0xff] %v217
      %s905 = scalar_lea.vmem [#allocation1], 1
      %906 = vst [vmem:[%s905] ss:$4 sm:$0xff] %v233
      %s907 = scalar_lea.vmem [#allocation1], 2
      %908 = vst [vmem:[%s907] ss:$4 sm:$0xff] %v234
      %s909 = scalar_lea.vmem [#allocation1], 3
      %910 = vst [vmem:[%s909] ss:$4 sm:$0xff] %v218
      %s911 = scalar_lea.vmem [#allocation1], 32
      %912 = vst [vmem:[%s911] ss:$4 sm:$0xff] %v235
      %s913 = scalar_lea.vmem [#allocation1], 33
      %914 = vst [vmem:[%s913] ss:$4 sm:$0xff] %v236
      %s915 = scalar_lea.vmem [#allocation1], 34
      %916 = vst [vmem:[%s915] ss:$4 sm:$0xff] %v219
      %s917 = scalar_lea.vmem [#allocation1], 35
      %918 = vst [vmem:[%s917] ss:$4 sm:$0xff] %v237
      %v919 = vld.sshfl [vmem:[#allocation1] sm:$0xff pattern:$0x73625140]
      %v920 = vld.sshfl [vmem:[#allocation1 + $0x20] sm:$0xff pattern:$0x73625140]
      %921 = vst [vmem:[#allocation1] ss:$4 sm:$0xff] %v238
      %922 = vst [vmem:[%s905] ss:$4 sm:$0xff] %v220
      %923 = vst [vmem:[%s907] ss:$4 sm:$0xff] %v239
      %924 = vst [vmem:[%s909] ss:$4 sm:$0xff] %v240
      %925 = vst [vmem:[%s911] ss:$4 sm:$0xff] %v221
      %926 = vst [vmem:[%s913] ss:$4 sm:$0xff] %v594
      %927 = vst [vmem:[%s915] ss:$4 sm:$0xff] %v595
      %928 = vst [vmem:[%s917] ss:$4 sm:$0xff] %v222
      %v929 = vld.sshfl [vmem:[#allocation1] sm:$0xff pattern:$0x73625140]
      %v930 = vld.sshfl [vmem:[#allocation1 + $0x20] sm:$0xff pattern:$0x73625140]
      %931 = vst [vmem:[#allocation1] ss:$4 sm:$0xff] %v896
      %932 = vst [vmem:[%s905] ss:$4 sm:$0xff] %v897
      %v933 = vld.sshfl [vmem:[#allocation1] sm:$0xff pattern:$0x73625140]
      %v934 = vsel %vm355, %v919, 0
      %v936 = vsel %vm355, %v920, 0
      %v938 = vsel %vm355, %v929, 0
      %v940 = vsel %vm355, %v930, 0
      %v942 = vsel %vm355, %v933, 0
      %v945 = vsel %vm366, %v903, 0
      %947 = vmatpush.msra.mxu0 0.0
      %948 = vmatpush.msra.mxu0 0.0
      %949 = vmatpush.msra.mxu0 0.0
      %950 = vmatpush.msra.mxu0 0.0
      %951 = vmatpush.msra.mxu0 0.0
      %952 = vmatpush.msra.mxu0 0.0
      %953 = vmatpush.msra.mxu0 0.0
      %954 = vmatpush.msra.mxu0 0.0
      %955 = vmatpush.msra.mxu0 0.0
      %956 = vmatpush.msra.mxu0 0.0
      %957 = vmatpush.msra.mxu0 0.0
      %958 = vmatpush.msra.mxu0 %v945
      %959 = vmatpush.msra.mxu0 %v902
      %960 = vmatpush.msra.mxu0 %v901
      %961 = vmatpush.msra.mxu0 %v900
      %962 = vmatpush.msra.mxu0 %v899
      %963 = vmatmul.f32.gmra.mxu0 %v934
      %v964 = vpop.f32.mrf.mxu0
      %v965 = vadd.f32 0.0, %v964
      %966 = vmatmul.f32.gmra.mxu0 %v936
      %v967 = vpop.f32.mrf.mxu0
      %v968 = vadd.f32 0.0, %v967
      %969 = vmatmul.f32.gmra.mxu0 %v938
      %v970 = vpop.f32.mrf.mxu0
      %v971 = vadd.f32 0.0, %v970
      %972 = vmatmul.f32.gmra.mxu0 %v940
      %v973 = vpop.f32.mrf.mxu0
      %v974 = vadd.f32 0.0, %v973
      %975 = vmatmul.f32.gmra.mxu0 %v942
      %v976 = vpop.f32.mrf.mxu0
      %v977 = vadd.f32 0.0, %v976
      %978 = vdwg.mxu0
      %v979 = vadd.f32 %v890, %v965
      %v980 = vadd.f32 %v891, %v968
      %v981 = vadd.f32 %v892, %v971
      %v982 = vadd.f32 %v893, %v974
      %v983 = vadd.f32 %v894, %v977
      %v984 = vrot.slane %v222, 6
      %v985 = vrot.slane %v222, 7
      %v986 = vrot.slane %v985, 2
      %v987 = vrot.slane %v896, 7
      %v988 = vsel %vm258, %v986, %v987
      %v989 = vrot.slane %v987, 2
      %v990 = vrot.slane %v897, 7
      %v991 = vsel %vm258, %v989, %v990
      %v992 = vrot.slane %v990, 2
      %v993 = vrot.slane %v984, 7
      %v994 = vsel %vm258, %v992, %v993
      %s995 = scalar_lea.vmem %s1, 280
      %v996 = vld [vmem:[%s995] sm:$0xff]
      %v997 = vld [vmem:[%s995 + $0x8] sm:$0xff]
      %v998 = vld [vmem:[%s995 + $0x10] sm:$0xff]
      %v999 = vld [vmem:[%s995 + $0x18] sm:$0xff]
      %v1000 = vld [vmem:[%s995 + $0x20] sm:$0xf]
      %1001 = vst [vmem:[#allocation1] ss:$4 sm:$0xff] %v282
      %s1002 = scalar_lea.vmem [#allocation1], 1
      %1003 = vst [vmem:[%s1002] ss:$4 sm:$0xff] %v285
      %s1004 = scalar_lea.vmem [#allocation1], 2
      %1005 = vst [vmem:[%s1004] ss:$4 sm:$0xff] %v288
      %s1006 = scalar_lea.vmem [#allocation1], 3
      %1007 = vst [vmem:[%s1006] ss:$4 sm:$0xff] %v292
      %s1008 = scalar_lea.vmem [#allocation1], 32
      %1009 = vst [vmem:[%s1008] ss:$4 sm:$0xff] %v295
      %s1010 = scalar_lea.vmem [#allocation1], 33
      %1011 = vst [vmem:[%s1010] ss:$4 sm:$0xff] %v298
      %s1012 = scalar_lea.vmem [#allocation1], 34
      %1013 = vst [vmem:[%s1012] ss:$4 sm:$0xff] %v302
      %s1014 = scalar_lea.vmem [#allocation1], 35
      %1015 = vst [vmem:[%s1014] ss:$4 sm:$0xff] %v305
      %v1016 = vld.sshfl [vmem:[#allocation1] sm:$0xff pattern:$0x73625140]
      %v1017 = vld.sshfl [vmem:[#allocation1 + $0x20] sm:$0xff pattern:$0x73625140]
      %1018 = vst [vmem:[#allocation1] ss:$4 sm:$0xff] %v308
      %1019 = vst [vmem:[%s1002] ss:$4 sm:$0xff] %v312
      %1020 = vst [vmem:[%s1004] ss:$4 sm:$0xff] %v315
      %1021 = vst [vmem:[%s1006] ss:$4 sm:$0xff] %v318
      %1022 = vst [vmem:[%s1008] ss:$4 sm:$0xff] %v686
      %1023 = vst [vmem:[%s1010] ss:$4 sm:$0xff] %v689
      %1024 = vst [vmem:[%s1012] ss:$4 sm:$0xff] %v692
      %1025 = vst [vmem:[%s1014] ss:$4 sm:$0xff] %v988
      %v1026 = vld.sshfl [vmem:[#allocation1] sm:$0xff pattern:$0x73625140]
      %v1027 = vld.sshfl [vmem:[#allocation1 + $0x20] sm:$0xff pattern:$0x73625140]
      %1028 = vst [vmem:[#allocation1] ss:$4 sm:$0xff] %v991
      %1029 = vst [vmem:[%s1002] ss:$4 sm:$0xff] %v994
      %v1030 = vld.sshfl [vmem:[#allocation1] sm:$0xff pattern:$0x73625140]
      %v1031 = vsel %vm355, %v1016, 0
      %v1033 = vsel %vm355, %v1017, 0
      %v1035 = vsel %vm355, %v1026, 0
      %v1037 = vsel %vm355, %v1027, 0
      %v1039 = vsel %vm355, %v1030, 0
      %v1042 = vsel %vm366, %v1000, 0
      %1044 = vmatpush.msra.mxu0 0.0
      %1045 = vmatpush.msra.mxu0 0.0
      %1046 = vmatpush.msra.mxu0 0.0
      %1047 = vmatpush.msra.mxu0 0.0
      %1048 = vmatpush.msra.mxu0 0.0
      %1049 = vmatpush.msra.mxu0 0.0
      %1050 = vmatpush.msra.mxu0 0.0
      %1051 = vmatpush.msra.mxu0 0.0
      %1052 = vmatpush.msra.mxu0 0.0
      %1053 = vmatpush.msra.mxu0 0.0
      %1054 = vmatpush.msra.mxu0 0.0
      %1055 = vmatpush.msra.mxu0 %v1042
      %1056 = vmatpush.msra.mxu0 %v999
      %1057 = vmatpush.msra.mxu0 %v998
      %1058 = vmatpush.msra.mxu0 %v997
      %1059 = vmatpush.msra.mxu0 %v996
      %1060 = vmatmul.f32.gmra.mxu0 %v1031
      %v1061 = vpop.f32.mrf.mxu0
      %v1062 = vadd.f32 0.0, %v1061
      %1063 = vmatmul.f32.gmra.mxu0 %v1033
      %v1064 = vpop.f32.mrf.mxu0
      %v1065 = vadd.f32 0.0, %v1064
      %1066 = vmatmul.f32.gmra.mxu0 %v1035
      %v1067 = vpop.f32.mrf.mxu0
      %v1068 = vadd.f32 0.0, %v1067
      %1069 = vmatmul.f32.gmra.mxu0 %v1037
      %v1070 = vpop.f32.mrf.mxu0
      %v1071 = vadd.f32 0.0, %v1070
      %1072 = vmatmul.f32.gmra.mxu0 %v1039
      %v1073 = vpop.f32.mrf.mxu0
      %v1074 = vadd.f32 0.0, %v1073
      %1075 = vdwg.mxu0
      %v1076 = vadd.f32 %v979, %v1062
      %v1077 = vadd.f32 %v980, %v1065
      %v1078 = vadd.f32 %v981, %v1068
      %v1079 = vadd.f32 %v982, %v1071
      %v1080 = vadd.f32 %v983, %v1074
      %1081 = vst.sshfl [vmem:[#allocation1] sm:$0xff pattern:$0x73625140] %v217
      %s1082 = scalar_lea.vmem [#allocation1], 1
      %v1083 = vld [vmem:[%s1082] ss:$4 sm:$0xff]
      %s1084 = scalar_lea.vmem [#allocation1], 2
      %v1085 = vld [vmem:[%s1084] ss:$4 sm:$0xff]
      %s1086 = scalar_lea.vmem [#allocation1], 3
      %v1087 = vld [vmem:[%s1086] ss:$4 sm:$0xff]
      %1088 = vst.sshfl [vmem:[#allocation1 + $0x20] sm:$0xff pattern:$0x73625140] %v218
      %s1089 = scalar_lea.vmem [#allocation1], 33
      %v1090 = vld [vmem:[%s1089] ss:$4 sm:$0xff]
      %s1091 = scalar_lea.vmem [#allocation1], 34
      %v1092 = vld [vmem:[%s1091] ss:$4 sm:$0xff]
      %s1093 = scalar_lea.vmem [#allocation1], 35
      %v1094 = vld [vmem:[%s1093] ss:$4 sm:$0xff]
      %1095 = vst.sshfl [vmem:[#allocation1] sm:$0xff pattern:$0x73625140] %v219
      %v1096 = vld [vmem:[%s1082] ss:$4 sm:$0xff]
      %v1097 = vld [vmem:[%s1084] ss:$4 sm:$0xff]
      %v1098 = vld [vmem:[%s1086] ss:$4 sm:$0xff]
      %1099 = vst.sshfl [vmem:[#allocation1 + $0x20] sm:$0xff pattern:$0x73625140] %v220
      %v1100 = vld [vmem:[%s1089] ss:$4 sm:$0xff]
      %v1101 = vld [vmem:[%s1091] ss:$4 sm:$0xff]
      %v1102 = vld [vmem:[%s1093] ss:$4 sm:$0xff]
      %1103 = vst.sshfl [vmem:[#allocation1] sm:$0xff pattern:$0x73625140] %v221
      %v1104 = vld [vmem:[%s1082] ss:$4 sm:$0xff]
      %v1105 = vld [vmem:[%s1084] ss:$4 sm:$0xff]
      %v1106 = vld [vmem:[%s1086] ss:$4 sm:$0xff]
      %1107 = vst.sshfl [vmem:[#allocation1 + $0x20] sm:$0xff pattern:$0x73625140] %v222
      %v1108 = vld [vmem:[%s1089] ss:$4 sm:$0xff]
      %v1109 = vld [vmem:[%s1091] ss:$4 sm:$0xff]
      %v1110 = vld [vmem:[%s1093] ss:$4 sm:$0xff]
      %s1111 = scalar_lea.vmem %s1, 320
      %v1112 = vld [vmem:[%s1111] sm:$0xff]
      %v1113 = vld [vmem:[%s1111 + $0x8] sm:$0xff]
      %v1114 = vld [vmem:[%s1111 + $0x10] sm:$0xff]
      %v1115 = vld [vmem:[%s1111 + $0x18] sm:$0xff]
      %v1116 = vld [vmem:[%s1111 + $0x20] sm:$0xf]
      %1117 = vst [vmem:[#allocation1] ss:$4 sm:$0xff] %v1083
      %s1118 = scalar_lea.vmem [#allocation1], 1
      %1119 = vst [vmem:[%s1118] ss:$4 sm:$0xff] %v1085
      %s1120 = scalar_lea.vmem [#allocation1], 2
      %1121 = vst [vmem:[%s1120] ss:$4 sm:$0xff] %v1087
      %s1122 = scalar_lea.vmem [#allocation1], 3
      %1123 = vst [vmem:[%s1122] ss:$4 sm:$0xff] %v1090
      %s1124 = scalar_lea.vmem [#allocation1], 32
      %1125 = vst [vmem:[%s1124] ss:$4 sm:$0xff] %v1092
      %s1126 = scalar_lea.vmem [#allocation1], 33
      %1127 = vst [vmem:[%s1126] ss:$4 sm:$0xff] %v1094
      %s1128 = scalar_lea.vmem [#allocation1], 34
      %1129 = vst [vmem:[%s1128] ss:$4 sm:$0xff] %v1096
      %s1130 = scalar_lea.vmem [#allocation1], 35
      %1131 = vst [vmem:[%s1130] ss:$4 sm:$0xff] %v1097
      %v1132 = vld.sshfl [vmem:[#allocation1] sm:$0xff pattern:$0x73625140]
      %v1133 = vld.sshfl [vmem:[#allocation1 + $0x20] sm:$0xff pattern:$0x73625140]
      %1134 = vst [vmem:[#allocation1] ss:$4 sm:$0xff] %v1098
      %1135 = vst [vmem:[%s1118] ss:$4 sm:$0xff] %v1100
      %1136 = vst [vmem:[%s1120] ss:$4 sm:$0xff] %v1101
      %1137 = vst [vmem:[%s1122] ss:$4 sm:$0xff] %v1102
      %1138 = vst [vmem:[%s1124] ss:$4 sm:$0xff] %v1104
      %1139 = vst [vmem:[%s1126] ss:$4 sm:$0xff] %v1105
      %1140 = vst [vmem:[%s1128] ss:$4 sm:$0xff] %v1106
      %1141 = vst [vmem:[%s1130] ss:$4 sm:$0xff] %v1108
      %v1142 = vld.sshfl [vmem:[#allocation1] sm:$0xff pattern:$0x73625140]
      %v1143 = vld.sshfl [vmem:[#allocation1 + $0x20] sm:$0xff pattern:$0x73625140]
      %1144 = vst [vmem:[#allocation1] ss:$4 sm:$0xff] %v1109
      %1145 = vst [vmem:[%s1118] ss:$4 sm:$0xff] %v1110
      %v1146 = vld.sshfl [vmem:[#allocation1] sm:$0xff pattern:$0x73625140]
      %v1147 = vsel %vm355, %v1132, 0
      %v1149 = vsel %vm355, %v1133, 0
      %v1151 = vsel %vm355, %v1142, 0
      %v1153 = vsel %vm355, %v1143, 0
      %v1155 = vsel %vm355, %v1146, 0
      %v1158 = vsel %vm366, %v1116, 0
      %1160 = vmatpush.msra.mxu0 0.0
      %1161 = vmatpush.msra.mxu0 0.0
      %1162 = vmatpush.msra.mxu0 0.0
      %1163 = vmatpush.msra.mxu0 0.0
      %1164 = vmatpush.msra.mxu0 0.0
      %1165 = vmatpush.msra.mxu0 0.0
      %1166 = vmatpush.msra.mxu0 0.0
      %1167 = vmatpush.msra.mxu0 0.0
      %1168 = vmatpush.msra.mxu0 0.0
      %1169 = vmatpush.msra.mxu0 0.0
      %1170 = vmatpush.msra.mxu0 0.0
      %1171 = vmatpush.msra.mxu0 %v1158
      %1172 = vmatpush.msra.mxu0 %v1115
      %1173 = vmatpush.msra.mxu0 %v1114
      %1174 = vmatpush.msra.mxu0 %v1113
      %1175 = vmatpush.msra.mxu0 %v1112
      %1176 = vmatmul.f32.gmra.mxu0 %v1147
      %v1177 = vpop.f32.mrf.mxu0
      %v1178 = vadd.f32 0.0, %v1177
      %1179 = vmatmul.f32.gmra.mxu0 %v1149
      %v1180 = vpop.f32.mrf.mxu0
      %v1181 = vadd.f32 0.0, %v1180
      %1182 = vmatmul.f32.gmra.mxu0 %v1151
      %v1183 = vpop.f32.mrf.mxu0
      %v1184 = vadd.f32 0.0, %v1183
      %1185 = vmatmul.f32.gmra.mxu0 %v1153
      %v1186 = vpop.f32.mrf.mxu0
      %v1187 = vadd.f32 0.0, %v1186
      %1188 = vmatmul.f32.gmra.mxu0 %v1155
      %v1189 = vpop.f32.mrf.mxu0
      %v1190 = vadd.f32 0.0, %v1189
      %1191 = vdwg.mxu0
      %v1192 = vadd.f32 %v1076, %v1178
      %v1193 = vadd.f32 %v1077, %v1181
      %v1194 = vadd.f32 %v1078, %v1184
      %v1195 = vadd.f32 %v1079, %v1187
      %v1196 = vadd.f32 %v1080, %v1190
      %vm1197 = vcmask 261120
      %1198 = vst.msk [vmem:[%s208] sm:$0xff] %vm1197, %v1192
      %1199 = vst.msk [vmem:[%s208 + $0x8] sm:$0xff] %vm1197, %v1193
      %1200 = vst.msk [vmem:[%s208 + $0x10] sm:$0xff] %vm1197, %v1194
      %1201 = vst.msk [vmem:[%s208 + $0x18] sm:$0xff] %vm1197, %v1195
      %vm1202 = vcmask 257024
      %1203 = vst.msk [vmem:[%s208 + $0x20] sm:$0xf] %vm1202, %v1196
      %v1204 = vsel %vm1197, %v1192, 0.0
      %v1205 = vsel %vm1197, %v1193, 0.0
      %v1206 = vadd.f32 %v1204, %v1205
      %v1207 = vsel %vm1197, %v1194, 0.0
      %v1208 = vadd.f32 %v1206, %v1207
      %v1209 = vsel %vm1197, %v1195, 0.0
      %v1210 = vadd.f32 %v1208, %v1209
      %v1211 = vsel %vm1202, %v1196, 0.0
      %v1212 = vadd.f32 %v1210, %v1211
      %v1213 = vrot.slane %v1212, 4
      %v1214 = vadd.f32 %v1212, %v1213
      %v1215 = vrot.slane %v1214, 2
      %v1216 = vadd.f32 %v1214, %v1215
      %v1217 = vrot.slane %v1216, 1
      %v1218 = vadd.f32 %v1216, %v1217
      %vm1219 = vcmask 253952
      %1220 = vst.msk [vmem:[%s211] sm:$0x1] %vm1219, %v1218
      %v1221 = vmul.f32 %v1192, %v1192
      %v1222 = vmul.f32 %v1193, %v1193
      %v1223 = vmul.f32 %v1194, %v1194
      %v1224 = vmul.f32 %v1195, %v1195
      %v1225 = vmul.f32 %v1196, %v1196
      %v1226 = vsel %vm1197, %v1221, 0.0
      %v1227 = vsel %vm1197, %v1222, 0.0
      %v1228 = vadd.f32 %v1226, %v1227
      %v1229 = vsel %vm1197, %v1223, 0.0
      %v1230 = vadd.f32 %v1228, %v1229
      %v1231 = vsel %vm1197, %v1224, 0.0
      %v1232 = vadd.f32 %v1230, %v1231
      %v1233 = vsel %vm1202, %v1225, 0.0
      %v1234 = vadd.f32 %v1232, %v1233
      %v1235 = vrot.slane %v1234, 4
      %v1236 = vadd.f32 %v1234, %v1235
      %v1237 = vrot.slane %v1236, 2
      %v1238 = vadd.f32 %v1236, %v1237
      %v1239 = vrot.slane %v1238, 1
      %v1240 = vadd.f32 %v1238, %v1239
      %1241 = vst.msk [vmem:[%s214] sm:$0x1] %vm1219, %v1240
      %p1242 = scmp.lt.s32.totalorder %s16, 1
      %s1243 = scalar_select %p1242, %s16, 1
      %s1244 = smul.addr %s1243, 5
      %s1245 = smul.addr %s1244, 8
      %s1246 = scalar_lea.vmem %s2, %s1245
      %p1247 = scmp.lt.s32.totalorder %s16, 1
      %s1248 = scalar_select %p1247, %s16, 1
      %s1249 = scalar_lea.vmem %s3, %s1248
      %p1250 = scmp.lt.s32.totalorder %s16, 1
      %s1251 = scalar_select %p1250, %s16, 1
      %s1252 = scalar_lea.vmem %s4, %s1251
      // Predicated region
      $region29: #{start2d_forward.2} parent=27 // pred_check
        %p1253 = pneg %p81
      $region30: #{start2d_forward.2} parent=27 // pred_check_branch
        %1255 = sbr.rel (%p1253) target = $region32
      $region31: #{start2d_forward.2} parent=27 // pred_region
        _
      $region32: #{start2d_forward.2} parent=27 // pred_fallthru
        _
      // Predicated region
      $region33: #{start2d_forward.2} parent=27 // pred_check
        %p1256 = pneg %p107
      $region34: #{start2d_forward.2} parent=27 // pred_check_branch
        %1258 = sbr.rel (%p1256) target = $region36
      $region35: #{start2d_forward.2} parent=27 // pred_region
        _
      $region36: #{start2d_forward.2} parent=27 // pred_fallthru
        _
      // Predicated region
      $region37: #{start2d_forward.2} parent=27 // pred_check
        %p1259 = pneg %p133
      $region38: #{start2d_forward.2} parent=27 // pred_check_branch
        %1261 = sbr.rel (%p1259) target = $region40
      $region39: #{start2d_forward.2} parent=27 // pred_region
        _
      $region40: #{start2d_forward.2} parent=27 // pred_fallthru
        _
    $region28: #{start2d_forward.2} parent=5 // pred_fallthru
      _
    %p1262 = scmp.le.s32.totalorder 2, %s11
    // Predicated region
    $region41: #{start2d_forward.2} parent=5 // pred_check
      %p1263 = pneg %p1262
    $region42: #{start2d_forward.2} parent=5 // pred_check_branch
      %1265 = sbr.rel (%p1263) target = $region44
    $region43: #{start2d_forward.2} parent=5 // pred_region
      %s1266 = ssub.s32 %s11, 2
      // Predicated region
      $region45: #{start2d_forward.2} parent=43 // pred_check
        %p1267 = pneg %p87
      $region46: #{start2d_forward.2} parent=43 // pred_check_branch
        %1269 = sbr.rel (%p1267) target = $region48
      $region47: #{start2d_forward.2} parent=43 // pred_region
        %p1270 = scmp.lt.s32.totalorder %s17, 1
        %s1271 = scalar_select %p1270, %s17, 1
        %s1272 = smul.addr %s1271, 5
        %s1273 = smul.addr %s1272, 8
        %s1274 = scalar_lea.vmem %s2, %s1273
      $region48: #{start2d_forward.2} parent=43 // pred_fallthru
        _
      // Predicated region
      $region49: #{start2d_forward.2} parent=43 // pred_check
        %p1275 = pneg %p113
      $region50: #{start2d_forward.2} parent=43 // pred_check_branch
        %1277 = sbr.rel (%p1275) target = $region52
      $region51: #{start2d_forward.2} parent=43 // pred_region
        %p1278 = scmp.lt.s32.totalorder %s17, 1
        %s1279 = scalar_select %p1278, %s17, 1
        %s1280 = scalar_lea.vmem %s3, %s1279
      $region52: #{start2d_forward.2} parent=43 // pred_fallthru
        _
      // Predicated region
      $region53: #{start2d_forward.2} parent=43 // pred_check
        %p1281 = pneg %p139
      $region54: #{start2d_forward.2} parent=43 // pred_check_branch
        %1283 = sbr.rel (%p1281) target = $region56
      $region55: #{start2d_forward.2} parent=43 // pred_region
        %p1284 = scmp.lt.s32.totalorder %s17, 1
        %s1285 = scalar_select %p1284, %s17, 1
        %s1286 = scalar_lea.vmem %s4, %s1285
      $region56: #{start2d_forward.2} parent=43 // pred_fallthru
        _
    $region44: #{start2d_forward.2} parent=5 // pred_fallthru
      _
  $region6: #{start2d_forward.2} parent=0 // loop_footer
    %s15 = sadd.s32 1, %s11
  $region7: #{start2d_forward.2} parent=0 // loop_footer_branch
    %10 = sbr.rel target = $region3
  $region8: #{start2d_forward.2} parent=0 // loop_exit
    _

</llo_original>
